<compile_context>
chip_gen: v7x
topology: tpu7x:2x2x1
jax: 0.10.0
libtpu: 0.0.40
codegen_flags: <defaults>
</compile_context>

<pallas_src>
import functools

import jax
import jax.numpy as jnp
from jax.experimental import pallas as pl
from jax.experimental.pallas import tpu as pltpu

_LANES = 128
# Candidate lane-dense slab widths, widest first.
_WIDTHS = (4096, 2048, 1024, 512, 256, 128)
# ~512K elements per block -> 2 MiB f32 per direction per grid step.
_TARGET_BLOCK_ELEMS = 512 * 1024
# Below this element count a plain XLA convert beats any kernel launch.
_SMALL_FALLBACK_ELEMS = 64 * 1024


def _cast_kernel(x_ref, o_ref):
    # Elementwise cast-to-float32 copy of the current (block_rows, width) tile.
    o_ref[...] = x_ref[...].astype(jnp.float32)


@functools.lru_cache(maxsize=None)
def _build_cast_call(rows: int, width: int, block_rows: int):
    """Build (and cache) a jitted pallas_call for one slab geometry."""
    grid = (pl.cdiv(rows, block_rows),)
    call = pl.pallas_call(
        _cast_kernel,
        out_shape=jax.ShapeDtypeStruct((rows, width), jnp.float32),
        grid_spec=pltpu.PrefetchScalarGridSpec(
            num_scalar_prefetch=0,
            grid=grid,
            in_specs=[pl.BlockSpec((block_rows, width), lambda i: (i, 0))],
            out_specs=pl.BlockSpec((block_rows, width), lambda i: (i, 0)),
        ),
        compiler_params=pltpu.CompilerParams(
            # Single parallel axis: lets both v7x TensorCores stream HBM.
            dimension_semantics=("parallel",),
        ),
    )
    # jit caches the compiled executable per operand shape/dtype.
    return jax.jit(call)


def _to_float32_pallas(x: jax.Array) -> jax.Array:
    """Pallas equivalent of `tensor.to(device).float()`."""
    if x.dtype == jnp.float32:
        # `.float()` on an f32 tensor is a no-op.
        return x

    n = x.size
    if n == 0 or n < _SMALL_FALLBACK_ELEMS or n % _LANES != 0:
        # Tiny tensors: kernel launch + per-shape Mosaic compile >> copy cost.
        # TODO(synk): large tensors whose size is not a multiple of 128 lanes
        # fall back to XLA's convert instead of a masked-tail Pallas kernel.
        return x.astype(jnp.float32)

    # Widest lane-dense slab width that divides n exactly (no pad copies).
    width = next(w for w in _WIDTHS if n % w == 0)
    rows = n // width

    # Row tile: ~_TARGET_BLOCK_ELEMS elements, multiple of 8 sublanes.  If the
    # whole slab is smaller, use the full extent (allowed by BlockSpec rules).
    block_rows = max(8, (_TARGET_BLOCK_ELEMS // width) // 8 * 8)
    block_rows = min(block_rows, rows)

    out2d = _build_cast_call(rows, width, block_rows)(x.reshape(rows, width))
    return out2d.reshape(x.shape)


class BaseModelPallas:
    """JAX/Pallas port of BaseModel: forward casts named inputs to float32."""

    def __init__(self, config=None, inputs_name=None):
        self.config = config
        # BaseModel.__init__ sets inputs_name = []; allow overriding so the
        # forward actually exercises the cast kernel in the demo.
        self.inputs_name = list(inputs_name) if inputs_name is not None else []
        self.outputs_name = []

    def forward(self, samples: dict) -> dict:
        # Mirrors the reference: rebinds each named input in the sample dict.
        for name in self.inputs_name:
            samples[name] = _to_float32_pallas(samples[name])
        return samples

    # TODO(synk): description/save/load/model_factory depend on the App/Config
    # framework singletons and filesystem I/O — no Pallas equivalent; omitted.


if __name__ == "__main__":
    key = jax.random.PRNGKey(0)
    k1, k2, k3 = jax.random.split(key, 3)

    # Small NCHW image and integer ids: hit the astype fast path.
    x_img = jax.random.normal(k1, (2, 4, 16, 16), dtype=jnp.bfloat16)
    x_ids = jax.random.randint(k2, (2, 8), 0, 32, dtype=jnp.int32)
    # Sequence features (batch=2, seq=999, hidden=1024): hits the Pallas
    # kernel with width=2048, rows=999, block_rows=256 -> grid=(4,) including
    # a partial last block (cdiv path).
    x_feat = jax.random.normal(k3, (2, 999, 1024), dtype=jnp.bfloat16)

    model = BaseModelPallas(config=None, inputs_name=["image", "ids", "feat"])
    samples = {"image": x_img, "ids": x_ids, "feat": x_feat}

    out = model.forward(samples)
    for v in out.values():
        jax.block_until_ready(v)

    # Correctness: dtype float32, shape preserved, values match astype(f32).
    assert out["image"].dtype == jnp.float32 and out["image"].shape == x_img.shape
    assert out["ids"].dtype == jnp.float32 and out["ids"].shape == x_ids.shape
    assert out["feat"].dtype == jnp.float32 and out["feat"].shape == x_feat.shape
    assert jnp.array_equal(out["image"], x_img.astype(jnp.float32))
    assert jnp.array_equal(out["ids"], x_ids.astype(jnp.float32))
    assert jnp.array_equal(out["feat"], x_feat.astype(jnp.float32))

    print("KERNEL_OK")
</pallas_src>

<mosaic_0001>
module attributes {stable_mosaic.version = 11 : i64} {
  func.func @_cast_kernel(%arg0: i32, %arg1: memref<256x2048xbf16, #tpu.memory_space<vmem>>, %arg2: memref<256x2048xf32, #tpu.memory_space<vmem>>) attributes {dimension_semantics = [#tpu.dimension_semantics<parallel>], iteration_bounds = array<i64: 4>, scalar_prefetch = 0 : i64, scratch_operands = 0 : i64, tpu.core_type = #tpu.core_type<tc>, window_params = [{transform_indices = @transform_0, window_bounds = array<i64: 256, 2048>}, {transform_indices = @transform_1, window_bounds = array<i64: 256, 2048>}]} {
    %c0 = arith.constant 0 : index
    %c0_0 = arith.constant 0 : index
    %0 = vector.load %arg1[%c0, %c0_0] : memref<256x2048xbf16, #tpu.memory_space<vmem>>, vector<256x2048xbf16>
    %1 = arith.extf %0 : vector<256x2048xbf16> to vector<256x2048xf32>
    %c0_1 = arith.constant 0 : index
    %c0_2 = arith.constant 0 : index
    %2 = vector.load %arg2[%c0_1, %c0_2] : memref<256x2048xf32, #tpu.memory_space<vmem>>, vector<256x2048xf32>
    tpu.vector_store %arg2[%c0_1, %c0_2], %1 {strides = array<i32>} : memref<256x2048xf32, #tpu.memory_space<vmem>>, vector<256x2048xf32>,
    return
  }
  func.func @transform_0(%arg0: i32) -> (i32, i32) {
    %c0_i32 = arith.constant 0 : i32
    %c0_i32_0 = arith.constant 0 : i32
    return %arg0, %c0_i32 : i32, i32
  }
  func.func @transform_1(%arg0: i32) -> (i32, i32) {
    %c0_i32 = arith.constant 0 : i32
    %c0_i32_0 = arith.constant 0 : i32
    return %arg0, %c0_i32 : i32, i32
  }
}

</mosaic_0001>

<llo_original>
// kernel: tpu_custom_call.1
$region0: #{tpu_custom_call.1}
  #allocation0 [shape = 'u32[]', space=smem, size = 0x4, offset = 0x4, fixed_abs, tag = 'smem constant byte address 0x4 - core index']
  #allocation1 [shape = 'u32[144,128]{1,0:T(1,128)}', space=vmem, size = 0x12000, scoped, tag = 'internal scratch']
  %s0 = inlined_call_operand.hbm [shape: bf16[999,2048], index: 0, kind: input, shape index: {}]
  %s1 = inlined_call_operand.hbm [shape: f32[999,2048], index: 1, kind: output, shape index: {}]
  %s2 = sld [smem:[#allocation0]]
  $region41: #{tpu_custom_call.1} parent=0
    _
  %s4 = ssub.s32 1, %s2
  %s5 = scalar_select 0, %s4, %s2
  $region1: #{tpu_custom_call.1} parent=0
    #allocation2 [shape = 'u8[2097152]{0}', space=vmem, size = 0x200000, scoped, tag = 'input window, operand 0']
    #allocation3 [shape = 's32[2]{0}', space=sflag, size = 0x8, scoped, tag = 'scoped memory for tpu_custom_call.1']
    #allocation4 [shape = 's32[2]{0}', space=sflag, size = 0x8, scoped, tag = 'scoped memory for tpu_custom_call.1']
    #allocation5 [shape = 'u8[4194304]{0}', space=vmem, size = 0x400000, scoped, tag = 'output window, operand 0']
    %6 = vsyncpa [#allocation3], 0
    %s7 = scalar_lea.sflag [#allocation3], 1
    %8 = vsyncpa %s7, 0
    %9 = vsyncpa [#allocation4], 0
    %s10 = scalar_lea.sflag [#allocation4], 1
    %11 = vsyncpa %s10, 0
    loop: start=0, step=1, limit=6
    $region2: #{tpu_custom_call.1} parent=1 // loop_pre_header
      _
    $region3: #{tpu_custom_call.1} parent=1 // loop_header
      %s13 = sphi 0, %s17
      %p14 = scmp.ge.s32.totalorder %s13, 6
      %s23 = sphi 0, %s25
      %s26 = sphi 0, %s23
      %s27 = sphi 0, %s26
      %s43 = sphi 0, %s27
      %s49 = sphi 0, %s51
      %s52 = sphi 0, %s49
      %s53 = sphi 0, %s52
      %s69 = sphi 0, %s53
    $region4: #{tpu_custom_call.1} parent=1 // loop_header_branch
      %16 = sbr.rel (%p14) target = $region8
    $region5: #{tpu_custom_call.1} parent=1 // loop_body
      %s18 = ssub.s32 %s13, 1
      %s19 = ssub.s32 %s13, 2
      %s20 = sadd.s32 %s13, 1
      %s21 = ssub.s32 %s13, %s20
      %p22 = scmp.eq.s32.totalorder %s21, 0
      %s24 = sadd.s32 %s23, 1
      %s25 = scalar_select %p22, %s23, %s24
      %p28 = pneg %p22
      %p29 = scmp.eq.s32.totalorder %s13, 3
      %p30 = por %p28, %p29
      %p31 = scmp.ne.s32.totalorder %s23, %s26
      %p32 = scmp.eq.s32.totalorder %s13, 0
      %p33 = por %p31, %p32
      %p34 = scmp.ne.s32.totalorder %s23, %s26
      %p35 = scmp.eq.s32.totalorder %s18, 3
      %p36 = por %p34, %p35
      %p37 = scmp.ne.s32.totalorder %s26, %s27
      %p38 = scmp.eq.s32.totalorder %s18, 0
      %p39 = por %p37, %p38
      %p40 = scmp.ne.s32.totalorder %s26, %s27
      %p41 = scmp.eq.s32.totalorder %s19, 3
      %p42 = por %p40, %p41
      %p44 = scmp.ne.s32.totalorder %s27, %s43
      %p45 = scmp.eq.s32.totalorder %s19, 0
      %p46 = por %p44, %p45
      %s47 = ssub.s32 %s13, %s20
      %p48 = scmp.eq.s32.totalorder %s47, 0
      %s50 = sadd.s32 %s49, 1
      %s51 = scalar_select %p48, %s49, %s50
      %p54 = pneg %p48
      %p55 = scmp.eq.s32.totalorder %s13, 3
      %p56 = por %p54, %p55
      %p57 = scmp.ne.s32.totalorder %s49, %s52
      %p58 = scmp.eq.s32.totalorder %s13, 0
      %p59 = por %p57, %p58
      %p60 = scmp.ne.s32.totalorder %s49, %s52
      %p61 = scmp.eq.s32.totalorder %s18, 3
      %p62 = por %p60, %p61
      %p63 = scmp.ne.s32.totalorder %s52, %s53
      %p64 = scmp.eq.s32.totalorder %s18, 0
      %p65 = por %p63, %p64
      %p66 = scmp.ne.s32.totalorder %s52, %s53
      %p67 = scmp.eq.s32.totalorder %s19, 3
      %p68 = por %p66, %p67
      %p70 = scmp.ne.s32.totalorder %s53, %s69
      %p71 = scmp.eq.s32.totalorder %s19, 0
      %p72 = por %p70, %p71
      %p73 = scmp.le.s32.totalorder 1, %s13
      %p74 = scmp.lt.s32.totalorder %s13, 5
      %p75 = pnand %p73, %p74
      %p76 = pneg %p75
      // Predicated region
      $region9: #{tpu_custom_call.1} parent=5 // pred_check
        _
      $region10: #{tpu_custom_call.1} parent=5 // pred_check_branch
        %78 = sbr.rel (%p75) target = $region12
      $region11: #{tpu_custom_call.1} parent=5 // pred_region
        %s79 = ssub.s32 %s13, 1
      $region12: #{tpu_custom_call.1} parent=5 // pred_fallthru
        _
      %p80 = scmp.lt.s32.totalorder %s13, 4
      // Predicated region
      $region13: #{tpu_custom_call.1} parent=5 // pred_check
        %p81 = pneg %p80
      $region14: #{tpu_custom_call.1} parent=5 // pred_check_branch
        %83 = sbr.rel (%p81) target = $region16
      $region15: #{tpu_custom_call.1} parent=5 // pred_region
        // Predicated region
        $region17: #{tpu_custom_call.1} parent=15 // pred_check
          %p84 = pneg %p33
        $region18: #{tpu_custom_call.1} parent=15 // pred_check_branch
          %86 = sbr.rel (%p84) target = $region20
        $region19: #{tpu_custom_call.1} parent=15 // pred_region
          %s87 = sand.u32 %s23, 1
          %s88 = scalar_lea.sflag [#allocation3], %s87
          %s89 = sand.u32 %s23, 1
          %s90 = smul.addr %s89, 2048
          %s91 = scalar_lea.vmem [#allocation2], %s90
          %s92 = smul.u32 32, %s13
          %s93 = ssub.s32 125, %s92
          %p94 = scmp.lt.s32.totalorder %s93, 32
          %s95 = scalar_select %p94, %s93, 32
          %s96 = smul.u32 64, %s95
          %s97 = smul.u32 %s96, 16
          %s99 = ssub.s32 32768, %s97
          %100 = vsyncadd %s88, %s99
          %p101 = scmp.ne.s32.totalorder 0, %s97
          %s102 = smul.addr %s92, 16
          %s103 = smul.addr %s102, 64
          %s104 = scalar_lea.hbm %s0, %s103
          %s105 = smul.u32 64, %s95
          %s106 = sshll.u32 %s91, 4
          %s107 = int_to_ptr.vmem [resolvable:$true] %s106
          %s108 = sshll.u32 %s105, 4
          %112 = dma.hbm_to_vmem [thread:$0]  (%p101), %s104, %s108, %s107, %s88, 1024, 1024, 64
        $region20: #{tpu_custom_call.1} parent=15 // pred_fallthru
          _
      $region16: #{tpu_custom_call.1} parent=5 // pred_fallthru
        _
      %p113 = scmp.le.s32.totalorder 1, %s13
      %p114 = scmp.lt.s32.totalorder %s13, 5
      %p115 = pnand %p113, %p114
      %p116 = pneg %p115
      // Predicated region
      $region21: #{tpu_custom_call.1} parent=5 // pred_check
        _
      $region22: #{tpu_custom_call.1} parent=5 // pred_check_branch
        %118 = sbr.rel (%p115) target = $region24
      $region23: #{tpu_custom_call.1} parent=5 // pred_region
        %s119 = ssub.s32 %s13, 1
        %s120 = sand.u32 %s26, 1
        %s121 = scalar_lea.sflag [#allocation3], %s120
        %s122 = sand.u32 %s26, 1
        %s123 = smul.addr %s122, 2048
        %s124 = scalar_lea.vmem [#allocation2], %s123
        // Predicated region
        $region25: #{tpu_custom_call.1} parent=23 // pred_check
          %p125 = pneg %p39
        $region26: #{tpu_custom_call.1} parent=23 // pred_check_branch
          %127 = sbr.rel (%p125) target = $region28
        $region27: #{tpu_custom_call.1} parent=23 // pred_region
          %128 = dma.done %s121, 32768
        $region28: #{tpu_custom_call.1} parent=23 // pred_fallthru
          _
        %s129 = sand.u32 %s26, 1
        %s130 = scalar_lea.sflag [#allocation3], %s129
        %s131 = sand.u32 %s26, 1
        %s132 = smul.addr %s131, 2048
        %s133 = scalar_lea.vmem [#allocation2], %s132
        %p134 = pneg %p39
        %p135 = pneg %p36
        %p136 = pneg %p65
        %p137 = pneg %p62
        %s138 = sand.u32 %s52, 1
        %s139 = scalar_lea.sflag [#allocation4], %s138
        %s140 = sand.u32 %s52, 1
        %s141 = smul.addr %s140, 4096
        %s142 = scalar_lea.vmem [#allocation5], %s141
        %s143 = smul.u32 32, %s18
        %s144 = ssub.s32 125, %s143
        %p145 = scmp.lt.s32.totalorder %s144, 32
        %s146 = scalar_select %p145, %s144, 32
        %s147 = smul.u32 64, %s146
        %s148 = smul.u32 %s147, 16
        %s149 = smul.u32 32, %s18
        %s150 = ssub.s32 125, %s149
        %p151 = scmp.lt.s32.totalorder %s150, 32
        %s152 = scalar_select %p151, %s150, 32
        %s153 = smul.u32 128, %s152
        %s154 = smul.u32 %s153, 16
        %v155 = vld [vmem:[%s124] sm:$0xff]
        %v156 = vld [vmem:[%s124 + $0x8] sm:$0xff]
        %v157 = vld [vmem:[%s124 + $0x10] sm:$0xff]
        %v158 = vld [vmem:[%s124 + $0x18] sm:$0xff]
        %v159 = vld [vmem:[%s124 + $0x20] sm:$0xff]
        %v160 = vld [vmem:[%s124 + $0x28] sm:$0xff]
        %v161 = vld [vmem:[%s124 + $0x30] sm:$0xff]
        %v162 = vld [vmem:[%s124 + $0x38] sm:$0xff]
        %v163 = vld [vmem:[%s124 + $0x40] sm:$0xff]
        %v164 = vld [vmem:[%s124 + $0x48] sm:$0xff]
        %v165 = vld [vmem:[%s124 + $0x50] sm:$0xff]
        %v166 = vld [vmem:[%s124 + $0x58] sm:$0xff]
        %v167 = vld [vmem:[%s124 + $0x60] sm:$0xff]
        %v168 = vld [vmem:[%s124 + $0x68] sm:$0xff]
        %v169 = vld [vmem:[%s124 + $0x70] sm:$0xff]
        %v170 = vld [vmem:[%s124 + $0x78] sm:$0xff]
        %v171 = vld [vmem:[%s124 + $0x80] sm:$0xff]
        %v172 = vld [vmem:[%s124 + $0x88] sm:$0xff]
        %v173 = vld [vmem:[%s124 + $0x90] sm:$0xff]
        %v174 = vld [vmem:[%s124 + $0x98] sm:$0xff]
        %v175 = vld [vmem:[%s124 + $0xa0] sm:$0xff]
        %v176 = vld [vmem:[%s124 + $0xa8] sm:$0xff]
        %v177 = vld [vmem:[%s124 + $0xb0] sm:$0xff]
        %v178 = vld [vmem:[%s124 + $0xb8] sm:$0xff]
        %v179 = vld [vmem:[%s124 + $0xc0] sm:$0xff]
        %v180 = vld [vmem:[%s124 + $0xc8] sm:$0xff]
        %v181 = vld [vmem:[%s124 + $0xd0] sm:$0xff]
        %v182 = vld [vmem:[%s124 + $0xd8] sm:$0xff]
        %v183 = vld [vmem:[%s124 + $0xe0] sm:$0xff]
        %v184 = vld [vmem:[%s124 + $0xe8] sm:$0xff]
        %v185 = vld [vmem:[%s124 + $0xf0] sm:$0xff]
        %v186 = vld [vmem:[%s124 + $0xf8] sm:$0xff]
        %v187 = vld [vmem:[%s124 + $0x100] sm:$0xff]
        %v188 = vld [vmem:[%s124 + $0x108] sm:$0xff]
        %v189 = vld [vmem:[%s124 + $0x110] sm:$0xff]
        %v190 = vld [vmem:[%s124 + $0x118] sm:$0xff]
        %v191 = vld [vmem:[%s124 + $0x120] sm:$0xff]
        %v192 = vld [vmem:[%s124 + $0x128] sm:$0xff]
        %v193 = vld [vmem:[%s124 + $0x130] sm:$0xff]
        %v194 = vld [vmem:[%s124 + $0x138] sm:$0xff]
        %v195 = vld [vmem:[%s124 + $0x140] sm:$0xff]
        %v196 = vld [vmem:[%s124 + $0x148] sm:$0xff]
        %v197 = vld [vmem:[%s124 + $0x150] sm:$0xff]
        %v198 = vld [vmem:[%s124 + $0x158] sm:$0xff]
        %v199 = vld [vmem:[%s124 + $0x160] sm:$0xff]
        %v200 = vld [vmem:[%s124 + $0x168] sm:$0xff]
        %v201 = vld [vmem:[%s124 + $0x170] sm:$0xff]
        %v202 = vld [vmem:[%s124 + $0x178] sm:$0xff]
        %v203 = vld [vmem:[%s124 + $0x180] sm:$0xff]
        %v204 = vld [vmem:[%s124 + $0x188] sm:$0xff]
        %v205 = vld [vmem:[%s124 + $0x190] sm:$0xff]
        %v206 = vld [vmem:[%s124 + $0x198] sm:$0xff]
        %v207 = vld [vmem:[%s124 + $0x1a0] sm:$0xff]
        %v208 = vld [vmem:[%s124 + $0x1a8] sm:$0xff]
        %v209 = vld [vmem:[%s124 + $0x1b0] sm:$0xff]
        %v210 = vld [vmem:[%s124 + $0x1b8] sm:$0xff]
        %v211 = vld [vmem:[%s124 + $0x1c0] sm:$0xff]
        %v212 = vld [vmem:[%s124 + $0x1c8] sm:$0xff]
        %v213 = vld [vmem:[%s124 + $0x1d0] sm:$0xff]
        %v214 = vld [vmem:[%s124 + $0x1d8] sm:$0xff]
        %v215 = vld [vmem:[%s124 + $0x1e0] sm:$0xff]
        %v216 = vld [vmem:[%s124 + $0x1e8] sm:$0xff]
        %v217 = vld [vmem:[%s124 + $0x1f0] sm:$0xff]
        %v218 = vld [vmem:[%s124 + $0x1f8] sm:$0xff]
        %v219 = vld [vmem:[%s124 + $0x200] sm:$0xff]
        %v220 = vld [vmem:[%s124 + $0x208] sm:$0xff]
        %v221 = vld [vmem:[%s124 + $0x210] sm:$0xff]
        %v222 = vld [vmem:[%s124 + $0x218] sm:$0xff]
        %v223 = vld [vmem:[%s124 + $0x220] sm:$0xff]
        %v224 = vld [vmem:[%s124 + $0x228] sm:$0xff]
        %v225 = vld [vmem:[%s124 + $0x230] sm:$0xff]
        %v226 = vld [vmem:[%s124 + $0x238] sm:$0xff]
        %v227 = vld [vmem:[%s124 + $0x240] sm:$0xff]
        %v228 = vld [vmem:[%s124 + $0x248] sm:$0xff]
        %v229 = vld [vmem:[%s124 + $0x250] sm:$0xff]
        %v230 = vld [vmem:[%s124 + $0x258] sm:$0xff]
        %v231 = vld [vmem:[%s124 + $0x260] sm:$0xff]
        %v232 = vld [vmem:[%s124 + $0x268] sm:$0xff]
        %v233 = vld [vmem:[%s124 + $0x270] sm:$0xff]
        %v234 = vld [vmem:[%s124 + $0x278] sm:$0xff]
        %v235 = vld [vmem:[%s124 + $0x280] sm:$0xff]
        %v236 = vld [vmem:[%s124 + $0x288] sm:$0xff]
        %v237 = vld [vmem:[%s124 + $0x290] sm:$0xff]
        %v238 = vld [vmem:[%s124 + $0x298] sm:$0xff]
        %v239 = vld [vmem:[%s124 + $0x2a0] sm:$0xff]
        %v240 = vld [vmem:[%s124 + $0x2a8] sm:$0xff]
        %v241 = vld [vmem:[%s124 + $0x2b0] sm:$0xff]
        %v242 = vld [vmem:[%s124 + $0x2b8] sm:$0xff]
        %v243 = vld [vmem:[%s124 + $0x2c0] sm:$0xff]
        %v244 = vld [vmem:[%s124 + $0x2c8] sm:$0xff]
        %v245 = vld [vmem:[%s124 + $0x2d0] sm:$0xff]
        %v246 = vld [vmem:[%s124 + $0x2d8] sm:$0xff]
        %v247 = vld [vmem:[%s124 + $0x2e0] sm:$0xff]
        %v248 = vld [vmem:[%s124 + $0x2e8] sm:$0xff]
        %v249 = vld [vmem:[%s124 + $0x2f0] sm:$0xff]
        %v250 = vld [vmem:[%s124 + $0x2f8] sm:$0xff]
        %v251 = vld [vmem:[%s124 + $0x300] sm:$0xff]
        %v252 = vld [vmem:[%s124 + $0x308] sm:$0xff]
        %v253 = vld [vmem:[%s124 + $0x310] sm:$0xff]
        %v254 = vld [vmem:[%s124 + $0x318] sm:$0xff]
        %v255 = vld [vmem:[%s124 + $0x320] sm:$0xff]
        %v256 = vld [vmem:[%s124 + $0x328] sm:$0xff]
        %v257 = vld [vmem:[%s124 + $0x330] sm:$0xff]
        %v258 = vld [vmem:[%s124 + $0x338] sm:$0xff]
        %v259 = vld [vmem:[%s124 + $0x340] sm:$0xff]
        %v260 = vld [vmem:[%s124 + $0x348] sm:$0xff]
        %v261 = vld [vmem:[%s124 + $0x350] sm:$0xff]
        %v262 = vld [vmem:[%s124 + $0x358] sm:$0xff]
        %v263 = vld [vmem:[%s124 + $0x360] sm:$0xff]
        %v264 = vld [vmem:[%s124 + $0x368] sm:$0xff]
        %v265 = vld [vmem:[%s124 + $0x370] sm:$0xff]
        %v266 = vld [vmem:[%s124 + $0x378] sm:$0xff]
        %v267 = vld [vmem:[%s124 + $0x380] sm:$0xff]
        %v268 = vld [vmem:[%s124 + $0x388] sm:$0xff]
        %v269 = vld [vmem:[%s124 + $0x390] sm:$0xff]
        %v270 = vld [vmem:[%s124 + $0x398] sm:$0xff]
        %v271 = vld [vmem:[%s124 + $0x3a0] sm:$0xff]
        %v272 = vld [vmem:[%s124 + $0x3a8] sm:$0xff]
        %v273 = vld [vmem:[%s124 + $0x3b0] sm:$0xff]
        %v274 = vld [vmem:[%s124 + $0x3b8] sm:$0xff]
        %v275 = vld [vmem:[%s124 + $0x3c0] sm:$0xff]
        %v276 = vld [vmem:[%s124 + $0x3c8] sm:$0xff]
        %v277 = vld [vmem:[%s124 + $0x3d0] sm:$0xff]
        %v278 = vld [vmem:[%s124 + $0x3d8] sm:$0xff]
        %v279 = vld [vmem:[%s124 + $0x3e0] sm:$0xff]
        %v280 = vld [vmem:[%s124 + $0x3e8] sm:$0xff]
        %v281 = vld [vmem:[%s124 + $0x3f0] sm:$0xff]
        %v282 = vld [vmem:[%s124 + $0x3f8] sm:$0xff]
        %v283 = vld [vmem:[%s124 + $0x400] sm:$0xff]
        %v284 = vld [vmem:[%s124 + $0x408] sm:$0xff]
        %v285 = vld [vmem:[%s124 + $0x410] sm:$0xff]
        %v286 = vld [vmem:[%s124 + $0x418] sm:$0xff]
        %v287 = vld [vmem:[%s124 + $0x420] sm:$0xff]
        %v288 = vld [vmem:[%s124 + $0x428] sm:$0xff]
        %v289 = vld [vmem:[%s124 + $0x430] sm:$0xff]
        %v290 = vld [vmem:[%s124 + $0x438] sm:$0xff]
        %v291 = vld [vmem:[%s124 + $0x440] sm:$0xff]
        %v292 = vld [vmem:[%s124 + $0x448] sm:$0xff]
        %v293 = vld [vmem:[%s124 + $0x450] sm:$0xff]
        %v294 = vld [vmem:[%s124 + $0x458] sm:$0xff]
        %v295 = vld [vmem:[%s124 + $0x460] sm:$0xff]
        %v296 = vld [vmem:[%s124 + $0x468] sm:$0xff]
        %v297 = vld [vmem:[%s124 + $0x470] sm:$0xff]
        %v298 = vld [vmem:[%s124 + $0x478] sm:$0xff]
        %v299 = vld [vmem:[%s124 + $0x480] sm:$0xff]
        %v300 = vld [vmem:[%s124 + $0x488] sm:$0xff]
        %v301 = vld [vmem:[%s124 + $0x490] sm:$0xff]
        %v302 = vld [vmem:[%s124 + $0x498] sm:$0xff]
        %v303 = vld [vmem:[%s124 + $0x4a0] sm:$0xff]
        %v304 = vld [vmem:[%s124 + $0x4a8] sm:$0xff]
        %v305 = vld [vmem:[%s124 + $0x4b0] sm:$0xff]
        %v306 = vld [vmem:[%s124 + $0x4b8] sm:$0xff]
        %v307 = vld [vmem:[%s124 + $0x4c0] sm:$0xff]
        %v308 = vld [vmem:[%s124 + $0x4c8] sm:$0xff]
        %v309 = vld [vmem:[%s124 + $0x4d0] sm:$0xff]
        %v310 = vld [vmem:[%s124 + $0x4d8] sm:$0xff]
        %v311 = vld [vmem:[%s124 + $0x4e0] sm:$0xff]
        %v312 = vld [vmem:[%s124 + $0x4e8] sm:$0xff]
        %v313 = vld [vmem:[%s124 + $0x4f0] sm:$0xff]
        %v314 = vld [vmem:[%s124 + $0x4f8] sm:$0xff]
        %v315 = vld [vmem:[%s124 + $0x500] sm:$0xff]
        %v316 = vld [vmem:[%s124 + $0x508] sm:$0xff]
        %v317 = vld [vmem:[%s124 + $0x510] sm:$0xff]
        %v318 = vld [vmem:[%s124 + $0x518] sm:$0xff]
        %v319 = vld [vmem:[%s124 + $0x520] sm:$0xff]
        %v320 = vld [vmem:[%s124 + $0x528] sm:$0xff]
        %v321 = vld [vmem:[%s124 + $0x530] sm:$0xff]
        %v322 = vld [vmem:[%s124 + $0x538] sm:$0xff]
        %v323 = vld [vmem:[%s124 + $0x540] sm:$0xff]
        %v324 = vld [vmem:[%s124 + $0x548] sm:$0xff]
        %v325 = vld [vmem:[%s124 + $0x550] sm:$0xff]
        %v326 = vld [vmem:[%s124 + $0x558] sm:$0xff]
        %v327 = vld [vmem:[%s124 + $0x560] sm:$0xff]
        %v328 = vld [vmem:[%s124 + $0x568] sm:$0xff]
        %v329 = vld [vmem:[%s124 + $0x570] sm:$0xff]
        %v330 = vld [vmem:[%s124 + $0x578] sm:$0xff]
        %v331 = vld [vmem:[%s124 + $0x580] sm:$0xff]
        %v332 = vld [vmem:[%s124 + $0x588] sm:$0xff]
        %v333 = vld [vmem:[%s124 + $0x590] sm:$0xff]
        %v334 = vld [vmem:[%s124 + $0x598] sm:$0xff]
        %v335 = vld [vmem:[%s124 + $0x5a0] sm:$0xff]
        %v336 = vld [vmem:[%s124 + $0x5a8] sm:$0xff]
        %v337 = vld [vmem:[%s124 + $0x5b0] sm:$0xff]
        %v338 = vld [vmem:[%s124 + $0x5b8] sm:$0xff]
        %v339 = vld [vmem:[%s124 + $0x5c0] sm:$0xff]
        %v340 = vld [vmem:[%s124 + $0x5c8] sm:$0xff]
        %v341 = vld [vmem:[%s124 + $0x5d0] sm:$0xff]
        %v342 = vld [vmem:[%s124 + $0x5d8] sm:$0xff]
        %v343 = vld [vmem:[%s124 + $0x5e0] sm:$0xff]
        %v344 = vld [vmem:[%s124 + $0x5e8] sm:$0xff]
        %v345 = vld [vmem:[%s124 + $0x5f0] sm:$0xff]
        %v346 = vld [vmem:[%s124 + $0x5f8] sm:$0xff]
        %v347 = vld [vmem:[%s124 + $0x600] sm:$0xff]
        %v348 = vld [vmem:[%s124 + $0x608] sm:$0xff]
        %v349 = vld [vmem:[%s124 + $0x610] sm:$0xff]
        %v350 = vld [vmem:[%s124 + $0x618] sm:$0xff]
        %v351 = vld [vmem:[%s124 + $0x620] sm:$0xff]
        %v352 = vld [vmem:[%s124 + $0x628] sm:$0xff]
        %v353 = vld [vmem:[%s124 + $0x630] sm:$0xff]
        %v354 = vld [vmem:[%s124 + $0x638] sm:$0xff]
        %v355 = vld [vmem:[%s124 + $0x640] sm:$0xff]
        %v356 = vld [vmem:[%s124 + $0x648] sm:$0xff]
        %v357 = vld [vmem:[%s124 + $0x650] sm:$0xff]
        %v358 = vld [vmem:[%s124 + $0x658] sm:$0xff]
        %v359 = vld [vmem:[%s124 + $0x660] sm:$0xff]
        %v360 = vld [vmem:[%s124 + $0x668] sm:$0xff]
        %v361 = vld [vmem:[%s124 + $0x670] sm:$0xff]
        %v362 = vld [vmem:[%s124 + $0x678] sm:$0xff]
        %v363 = vld [vmem:[%s124 + $0x680] sm:$0xff]
        %v364 = vld [vmem:[%s124 + $0x688] sm:$0xff]
        %v365 = vld [vmem:[%s124 + $0x690] sm:$0xff]
        %v366 = vld [vmem:[%s124 + $0x698] sm:$0xff]
        %v367 = vld [vmem:[%s124 + $0x6a0] sm:$0xff]
        %v368 = vld [vmem:[%s124 + $0x6a8] sm:$0xff]
        %v369 = vld [vmem:[%s124 + $0x6b0] sm:$0xff]
        %v370 = vld [vmem:[%s124 + $0x6b8] sm:$0xff]
        %v371 = vld [vmem:[%s124 + $0x6c0] sm:$0xff]
        %v372 = vld [vmem:[%s124 + $0x6c8] sm:$0xff]
        %v373 = vld [vmem:[%s124 + $0x6d0] sm:$0xff]
        %v374 = vld [vmem:[%s124 + $0x6d8] sm:$0xff]
        %v375 = vld [vmem:[%s124 + $0x6e0] sm:$0xff]
        %v376 = vld [vmem:[%s124 + $0x6e8] sm:$0xff]
        %v377 = vld [vmem:[%s124 + $0x6f0] sm:$0xff]
        %v378 = vld [vmem:[%s124 + $0x6f8] sm:$0xff]
        %v379 = vld [vmem:[%s124 + $0x700] sm:$0xff]
        %v380 = vld [vmem:[%s124 + $0x708] sm:$0xff]
        %v381 = vld [vmem:[%s124 + $0x710] sm:$0xff]
        %v382 = vld [vmem:[%s124 + $0x718] sm:$0xff]
        %v383 = vld [vmem:[%s124 + $0x720] sm:$0xff]
        %v384 = vld [vmem:[%s124 + $0x728] sm:$0xff]
        %v385 = vld [vmem:[%s124 + $0x730] sm:$0xff]
        %v386 = vld [vmem:[%s124 + $0x738] sm:$0xff]
        %v387 = vld [vmem:[%s124 + $0x740] sm:$0xff]
        %v388 = vld [vmem:[%s124 + $0x748] sm:$0xff]
        %v389 = vld [vmem:[%s124 + $0x750] sm:$0xff]
        %v390 = vld [vmem:[%s124 + $0x758] sm:$0xff]
        %v391 = vld [vmem:[%s124 + $0x760] sm:$0xff]
        %v392 = vld [vmem:[%s124 + $0x768] sm:$0xff]
        %v393 = vld [vmem:[%s124 + $0x770] sm:$0xff]
        %v394 = vld [vmem:[%s124 + $0x778] sm:$0xff]
        %v395 = vld [vmem:[%s124 + $0x780] sm:$0xff]
        %v396 = vld [vmem:[%s124 + $0x788] sm:$0xff]
        %v397 = vld [vmem:[%s124 + $0x790] sm:$0xff]
        %v398 = vld [vmem:[%s124 + $0x798] sm:$0xff]
        %v399 = vld [vmem:[%s124 + $0x7a0] sm:$0xff]
        %v400 = vld [vmem:[%s124 + $0x7a8] sm:$0xff]
        %v401 = vld [vmem:[%s124 + $0x7b0] sm:$0xff]
        %v402 = vld [vmem:[%s124 + $0x7b8] sm:$0xff]
        %v403 = vld [vmem:[%s124 + $0x7c0] sm:$0xff]
        %v404 = vld [vmem:[%s124 + $0x7c8] sm:$0xff]
        %v405 = vld [vmem:[%s124 + $0x7d0] sm:$0xff]
        %v406 = vld [vmem:[%s124 + $0x7d8] sm:$0xff]
        %v407 = vld [vmem:[%s124 + $0x7e0] sm:$0xff]
        %v408 = vld [vmem:[%s124 + $0x7e8] sm:$0xff]
        %v409 = vld [vmem:[%s124 + $0x7f0] sm:$0xff]
        %v410 = vld [vmem:[%s124 + $0x7f8] sm:$0xff]
        %v411 = vunpack.c.l.bf16 %v155
        %v412 = vunpack.c.h.bf16 %v155
        %v413 = vunpack.c.l.bf16 %v156
        %v414 = vunpack.c.h.bf16 %v156
        %v415 = vunpack.c.l.bf16 %v157
        %v416 = vunpack.c.h.bf16 %v157
        %v417 = vunpack.c.l.bf16 %v158
        %v418 = vunpack.c.h.bf16 %v158
        %v419 = vunpack.c.l.bf16 %v159
        %v420 = vunpack.c.h.bf16 %v159
        %v421 = vunpack.c.l.bf16 %v160
        %v422 = vunpack.c.h.bf16 %v160
        %v423 = vunpack.c.l.bf16 %v161
        %v424 = vunpack.c.h.bf16 %v161
        %v425 = vunpack.c.l.bf16 %v162
        %v426 = vunpack.c.h.bf16 %v162
        %v427 = vunpack.c.l.bf16 %v163
        %v428 = vunpack.c.h.bf16 %v163
        %v429 = vunpack.c.l.bf16 %v164
        %v430 = vunpack.c.h.bf16 %v164
        %v431 = vunpack.c.l.bf16 %v165
        %v432 = vunpack.c.h.bf16 %v165
        %v433 = vunpack.c.l.bf16 %v166
        %v434 = vunpack.c.h.bf16 %v166
        %v435 = vunpack.c.l.bf16 %v167
        %v436 = vunpack.c.h.bf16 %v167
        %v437 = vunpack.c.l.bf16 %v168
        %v438 = vunpack.c.h.bf16 %v168
        %v439 = vunpack.c.l.bf16 %v169
        %v440 = vunpack.c.h.bf16 %v169
        %v441 = vunpack.c.l.bf16 %v170
        %v442 = vunpack.c.h.bf16 %v170
        %v443 = vunpack.c.l.bf16 %v171
        %v444 = vunpack.c.h.bf16 %v171
        %v445 = vunpack.c.l.bf16 %v172
        %v446 = vunpack.c.h.bf16 %v172
        %v447 = vunpack.c.l.bf16 %v173
        %v448 = vunpack.c.h.bf16 %v173
        %v449 = vunpack.c.l.bf16 %v174
        %v450 = vunpack.c.h.bf16 %v174
        %v451 = vunpack.c.l.bf16 %v175
        %v452 = vunpack.c.h.bf16 %v175
        %v453 = vunpack.c.l.bf16 %v176
        %v454 = vunpack.c.h.bf16 %v176
        %v455 = vunpack.c.l.bf16 %v177
        %v456 = vunpack.c.h.bf16 %v177
        %v457 = vunpack.c.l.bf16 %v178
        %v458 = vunpack.c.h.bf16 %v178
        %v459 = vunpack.c.l.bf16 %v179
        %v460 = vunpack.c.h.bf16 %v179
        %v461 = vunpack.c.l.bf16 %v180
        %v462 = vunpack.c.h.bf16 %v180
        %v463 = vunpack.c.l.bf16 %v181
        %v464 = vunpack.c.h.bf16 %v181
        %v465 = vunpack.c.l.bf16 %v182
        %v466 = vunpack.c.h.bf16 %v182
        %v467 = vunpack.c.l.bf16 %v183
        %v468 = vunpack.c.h.bf16 %v183
        %v469 = vunpack.c.l.bf16 %v184
        %v470 = vunpack.c.h.bf16 %v184
        %v471 = vunpack.c.l.bf16 %v185
        %v472 = vunpack.c.h.bf16 %v185
        %v473 = vunpack.c.l.bf16 %v186
        %v474 = vunpack.c.h.bf16 %v186
        %v475 = vunpack.c.l.bf16 %v187
        %v476 = vunpack.c.h.bf16 %v187
        %v477 = vunpack.c.l.bf16 %v188
        %v478 = vunpack.c.h.bf16 %v188
        %v479 = vunpack.c.l.bf16 %v189
        %v480 = vunpack.c.h.bf16 %v189
        %v481 = vunpack.c.l.bf16 %v190
        %v482 = vunpack.c.h.bf16 %v190
        %v483 = vunpack.c.l.bf16 %v191
        %v484 = vunpack.c.h.bf16 %v191
        %v485 = vunpack.c.l.bf16 %v192
        %v486 = vunpack.c.h.bf16 %v192
        %v487 = vunpack.c.l.bf16 %v193
        %v488 = vunpack.c.h.bf16 %v193
        %v489 = vunpack.c.l.bf16 %v194
        %v490 = vunpack.c.h.bf16 %v194
        %v491 = vunpack.c.l.bf16 %v195
        %v492 = vunpack.c.h.bf16 %v195
        %v493 = vunpack.c.l.bf16 %v196
        %v494 = vunpack.c.h.bf16 %v196
        %v495 = vunpack.c.l.bf16 %v197
        %v496 = vunpack.c.h.bf16 %v197
        %v497 = vunpack.c.l.bf16 %v198
        %v498 = vunpack.c.h.bf16 %v198
        %v499 = vunpack.c.l.bf16 %v199
        %v500 = vunpack.c.h.bf16 %v199
        %v501 = vunpack.c.l.bf16 %v200
        %v502 = vunpack.c.h.bf16 %v200
        %v503 = vunpack.c.l.bf16 %v201
        %v504 = vunpack.c.h.bf16 %v201
        %v505 = vunpack.c.l.bf16 %v202
        %v506 = vunpack.c.h.bf16 %v202
        %v507 = vunpack.c.l.bf16 %v203
        %v508 = vunpack.c.h.bf16 %v203
        %v509 = vunpack.c.l.bf16 %v204
        %v510 = vunpack.c.h.bf16 %v204
        %v511 = vunpack.c.l.bf16 %v205
        %v512 = vunpack.c.h.bf16 %v205
        %v513 = vunpack.c.l.bf16 %v206
        %v514 = vunpack.c.h.bf16 %v206
        %v515 = vunpack.c.l.bf16 %v207
        %v516 = vunpack.c.h.bf16 %v207
        %v517 = vunpack.c.l.bf16 %v208
        %v518 = vunpack.c.h.bf16 %v208
        %v519 = vunpack.c.l.bf16 %v209
        %v520 = vunpack.c.h.bf16 %v209
        %v521 = vunpack.c.l.bf16 %v210
        %v522 = vunpack.c.h.bf16 %v210
        %v523 = vunpack.c.l.bf16 %v211
        %v524 = vunpack.c.h.bf16 %v211
        %v525 = vunpack.c.l.bf16 %v212
        %v526 = vunpack.c.h.bf16 %v212
        %v527 = vunpack.c.l.bf16 %v213
        %v528 = vunpack.c.h.bf16 %v213
        %v529 = vunpack.c.l.bf16 %v214
        %v530 = vunpack.c.h.bf16 %v214
        %v531 = vunpack.c.l.bf16 %v215
        %v532 = vunpack.c.h.bf16 %v215
        %v533 = vunpack.c.l.bf16 %v216
        %v534 = vunpack.c.h.bf16 %v216
        %v535 = vunpack.c.l.bf16 %v217
        %v536 = vunpack.c.h.bf16 %v217
        %v537 = vunpack.c.l.bf16 %v218
        %v538 = vunpack.c.h.bf16 %v218
        %v539 = vunpack.c.l.bf16 %v219
        %v540 = vunpack.c.h.bf16 %v219
        %v541 = vunpack.c.l.bf16 %v220
        %v542 = vunpack.c.h.bf16 %v220
        %v543 = vunpack.c.l.bf16 %v221
        %v544 = vunpack.c.h.bf16 %v221
        %v545 = vunpack.c.l.bf16 %v222
        %v546 = vunpack.c.h.bf16 %v222
        %v547 = vunpack.c.l.bf16 %v223
        %v548 = vunpack.c.h.bf16 %v223
        %v549 = vunpack.c.l.bf16 %v224
        %v550 = vunpack.c.h.bf16 %v224
        %v551 = vunpack.c.l.bf16 %v225
        %v552 = vunpack.c.h.bf16 %v225
        %v553 = vunpack.c.l.bf16 %v226
        %v554 = vunpack.c.h.bf16 %v226
        %v555 = vunpack.c.l.bf16 %v227
        %v556 = vunpack.c.h.bf16 %v227
        %v557 = vunpack.c.l.bf16 %v228
        %v558 = vunpack.c.h.bf16 %v228
        %v559 = vunpack.c.l.bf16 %v229
        %v560 = vunpack.c.h.bf16 %v229
        %v561 = vunpack.c.l.bf16 %v230
        %v562 = vunpack.c.h.bf16 %v230
        %v563 = vunpack.c.l.bf16 %v231
        %v564 = vunpack.c.h.bf16 %v231
        %v565 = vunpack.c.l.bf16 %v232
        %v566 = vunpack.c.h.bf16 %v232
        %v567 = vunpack.c.l.bf16 %v233
        %v568 = vunpack.c.h.bf16 %v233
        %v569 = vunpack.c.l.bf16 %v234
        %v570 = vunpack.c.h.bf16 %v234
        %v571 = vunpack.c.l.bf16 %v235
        %v572 = vunpack.c.h.bf16 %v235
        %v573 = vunpack.c.l.bf16 %v236
        %v574 = vunpack.c.h.bf16 %v236
        %v575 = vunpack.c.l.bf16 %v237
        %v576 = vunpack.c.h.bf16 %v237
        %v577 = vunpack.c.l.bf16 %v238
        %v578 = vunpack.c.h.bf16 %v238
        %v579 = vunpack.c.l.bf16 %v239
        %v580 = vunpack.c.h.bf16 %v239
        %v581 = vunpack.c.l.bf16 %v240
        %v582 = vunpack.c.h.bf16 %v240
        %v583 = vunpack.c.l.bf16 %v241
        %v584 = vunpack.c.h.bf16 %v241
        %v585 = vunpack.c.l.bf16 %v242
        %v586 = vunpack.c.h.bf16 %v242
        %v587 = vunpack.c.l.bf16 %v243
        %v588 = vunpack.c.h.bf16 %v243
        %v589 = vunpack.c.l.bf16 %v244
        %v590 = vunpack.c.h.bf16 %v244
        %v591 = vunpack.c.l.bf16 %v245
        %v592 = vunpack.c.h.bf16 %v245
        %v593 = vunpack.c.l.bf16 %v246
        %v594 = vunpack.c.h.bf16 %v246
        %v595 = vunpack.c.l.bf16 %v247
        %v596 = vunpack.c.h.bf16 %v247
        %v597 = vunpack.c.l.bf16 %v248
        %v598 = vunpack.c.h.bf16 %v248
        %v599 = vunpack.c.l.bf16 %v249
        %v600 = vunpack.c.h.bf16 %v249
        %v601 = vunpack.c.l.bf16 %v250
        %v602 = vunpack.c.h.bf16 %v250
        %v603 = vunpack.c.l.bf16 %v251
        %v604 = vunpack.c.h.bf16 %v251
        %v605 = vunpack.c.l.bf16 %v252
        %v606 = vunpack.c.h.bf16 %v252
        %v607 = vunpack.c.l.bf16 %v253
        %v608 = vunpack.c.h.bf16 %v253
        %v609 = vunpack.c.l.bf16 %v254
        %v610 = vunpack.c.h.bf16 %v254
        %v611 = vunpack.c.l.bf16 %v255
        %v612 = vunpack.c.h.bf16 %v255
        %v613 = vunpack.c.l.bf16 %v256
        %v614 = vunpack.c.h.bf16 %v256
        %v615 = vunpack.c.l.bf16 %v257
        %v616 = vunpack.c.h.bf16 %v257
        %v617 = vunpack.c.l.bf16 %v258
        %v618 = vunpack.c.h.bf16 %v258
        %v619 = vunpack.c.l.bf16 %v259
        %v620 = vunpack.c.h.bf16 %v259
        %v621 = vunpack.c.l.bf16 %v260
        %v622 = vunpack.c.h.bf16 %v260
        %v623 = vunpack.c.l.bf16 %v261
        %v624 = vunpack.c.h.bf16 %v261
        %v625 = vunpack.c.l.bf16 %v262
        %v626 = vunpack.c.h.bf16 %v262
        %v627 = vunpack.c.l.bf16 %v263
        %v628 = vunpack.c.h.bf16 %v263
        %v629 = vunpack.c.l.bf16 %v264
        %v630 = vunpack.c.h.bf16 %v264
        %v631 = vunpack.c.l.bf16 %v265
        %v632 = vunpack.c.h.bf16 %v265
        %v633 = vunpack.c.l.bf16 %v266
        %v634 = vunpack.c.h.bf16 %v266
        %v635 = vunpack.c.l.bf16 %v267
        %v636 = vunpack.c.h.bf16 %v267
        %v637 = vunpack.c.l.bf16 %v268
        %v638 = vunpack.c.h.bf16 %v268
        %v639 = vunpack.c.l.bf16 %v269
        %v640 = vunpack.c.h.bf16 %v269
        %v641 = vunpack.c.l.bf16 %v270
        %v642 = vunpack.c.h.bf16 %v270
        %v643 = vunpack.c.l.bf16 %v271
        %v644 = vunpack.c.h.bf16 %v271
        %v645 = vunpack.c.l.bf16 %v272
        %v646 = vunpack.c.h.bf16 %v272
        %v647 = vunpack.c.l.bf16 %v273
        %v648 = vunpack.c.h.bf16 %v273
        %v649 = vunpack.c.l.bf16 %v274
        %v650 = vunpack.c.h.bf16 %v274
        %v651 = vunpack.c.l.bf16 %v275
        %v652 = vunpack.c.h.bf16 %v275
        %v653 = vunpack.c.l.bf16 %v276
        %v654 = vunpack.c.h.bf16 %v276
        %v655 = vunpack.c.l.bf16 %v277
        %v656 = vunpack.c.h.bf16 %v277
        %v657 = vunpack.c.l.bf16 %v278
        %v658 = vunpack.c.h.bf16 %v278
        %v659 = vunpack.c.l.bf16 %v279
        %v660 = vunpack.c.h.bf16 %v279
        %v661 = vunpack.c.l.bf16 %v280
        %v662 = vunpack.c.h.bf16 %v280
        %v663 = vunpack.c.l.bf16 %v281
        %v664 = vunpack.c.h.bf16 %v281
        %v665 = vunpack.c.l.bf16 %v282
        %v666 = vunpack.c.h.bf16 %v282
        %v667 = vunpack.c.l.bf16 %v283
        %v668 = vunpack.c.h.bf16 %v283
        %v669 = vunpack.c.l.bf16 %v284
        %v670 = vunpack.c.h.bf16 %v284
        %v671 = vunpack.c.l.bf16 %v285
        %v672 = vunpack.c.h.bf16 %v285
        %v673 = vunpack.c.l.bf16 %v286
        %v674 = vunpack.c.h.bf16 %v286
        %v675 = vunpack.c.l.bf16 %v287
        %v676 = vunpack.c.h.bf16 %v287
        %v677 = vunpack.c.l.bf16 %v288
        %v678 = vunpack.c.h.bf16 %v288
        %v679 = vunpack.c.l.bf16 %v289
        %v680 = vunpack.c.h.bf16 %v289
        %v681 = vunpack.c.l.bf16 %v290
        %v682 = vunpack.c.h.bf16 %v290
        %v683 = vunpack.c.l.bf16 %v291
        %v684 = vunpack.c.h.bf16 %v291
        %v685 = vunpack.c.l.bf16 %v292
        %v686 = vunpack.c.h.bf16 %v292
        %v687 = vunpack.c.l.bf16 %v293
        %v688 = vunpack.c.h.bf16 %v293
        %v689 = vunpack.c.l.bf16 %v294
        %v690 = vunpack.c.h.bf16 %v294
        %v691 = vunpack.c.l.bf16 %v295
        %v692 = vunpack.c.h.bf16 %v295
        %v693 = vunpack.c.l.bf16 %v296
        %v694 = vunpack.c.h.bf16 %v296
        %v695 = vunpack.c.l.bf16 %v297
        %v696 = vunpack.c.h.bf16 %v297
        %v697 = vunpack.c.l.bf16 %v298
        %v698 = vunpack.c.h.bf16 %v298
        %v699 = vunpack.c.l.bf16 %v299
        %v700 = vunpack.c.h.bf16 %v299
        %v701 = vunpack.c.l.bf16 %v300
        %v702 = vunpack.c.h.bf16 %v300
        %v703 = vunpack.c.l.bf16 %v301
        %v704 = vunpack.c.h.bf16 %v301
        %v705 = vunpack.c.l.bf16 %v302
        %v706 = vunpack.c.h.bf16 %v302
        %v707 = vunpack.c.l.bf16 %v303
        %v708 = vunpack.c.h.bf16 %v303
        %v709 = vunpack.c.l.bf16 %v304
        %v710 = vunpack.c.h.bf16 %v304
        %v711 = vunpack.c.l.bf16 %v305
        %v712 = vunpack.c.h.bf16 %v305
        %v713 = vunpack.c.l.bf16 %v306
        %v714 = vunpack.c.h.bf16 %v306
        %v715 = vunpack.c.l.bf16 %v307
        %v716 = vunpack.c.h.bf16 %v307
        %v717 = vunpack.c.l.bf16 %v308
        %v718 = vunpack.c.h.bf16 %v308
        %v719 = vunpack.c.l.bf16 %v309
        %v720 = vunpack.c.h.bf16 %v309
        %v721 = vunpack.c.l.bf16 %v310
        %v722 = vunpack.c.h.bf16 %v310
        %v723 = vunpack.c.l.bf16 %v311
        %v724 = vunpack.c.h.bf16 %v311
        %v725 = vunpack.c.l.bf16 %v312
        %v726 = vunpack.c.h.bf16 %v312
        %v727 = vunpack.c.l.bf16 %v313
        %v728 = vunpack.c.h.bf16 %v313
        %v729 = vunpack.c.l.bf16 %v314
        %v730 = vunpack.c.h.bf16 %v314
        %v731 = vunpack.c.l.bf16 %v315
        %v732 = vunpack.c.h.bf16 %v315
        %v733 = vunpack.c.l.bf16 %v316
        %v734 = vunpack.c.h.bf16 %v316
        %v735 = vunpack.c.l.bf16 %v317
        %v736 = vunpack.c.h.bf16 %v317
        %v737 = vunpack.c.l.bf16 %v318
        %v738 = vunpack.c.h.bf16 %v318
        %v739 = vunpack.c.l.bf16 %v319
        %v740 = vunpack.c.h.bf16 %v319
        %v741 = vunpack.c.l.bf16 %v320
        %v742 = vunpack.c.h.bf16 %v320
        %v743 = vunpack.c.l.bf16 %v321
        %v744 = vunpack.c.h.bf16 %v321
        %v745 = vunpack.c.l.bf16 %v322
        %v746 = vunpack.c.h.bf16 %v322
        %v747 = vunpack.c.l.bf16 %v323
        %v748 = vunpack.c.h.bf16 %v323
        %v749 = vunpack.c.l.bf16 %v324
        %v750 = vunpack.c.h.bf16 %v324
        %v751 = vunpack.c.l.bf16 %v325
        %v752 = vunpack.c.h.bf16 %v325
        %v753 = vunpack.c.l.bf16 %v326
        %v754 = vunpack.c.h.bf16 %v326
        %v755 = vunpack.c.l.bf16 %v327
        %v756 = vunpack.c.h.bf16 %v327
        %v757 = vunpack.c.l.bf16 %v328
        %v758 = vunpack.c.h.bf16 %v328
        %v759 = vunpack.c.l.bf16 %v329
        %v760 = vunpack.c.h.bf16 %v329
        %v761 = vunpack.c.l.bf16 %v330
        %v762 = vunpack.c.h.bf16 %v330
        %v763 = vunpack.c.l.bf16 %v331
        %v764 = vunpack.c.h.bf16 %v331
        %v765 = vunpack.c.l.bf16 %v332
        %v766 = vunpack.c.h.bf16 %v332
        %v767 = vunpack.c.l.bf16 %v333
        %v768 = vunpack.c.h.bf16 %v333
        %v769 = vunpack.c.l.bf16 %v334
        %v770 = vunpack.c.h.bf16 %v334
        %v771 = vunpack.c.l.bf16 %v335
        %v772 = vunpack.c.h.bf16 %v335
        %v773 = vunpack.c.l.bf16 %v336
        %v774 = vunpack.c.h.bf16 %v336
        %v775 = vunpack.c.l.bf16 %v337
        %v776 = vunpack.c.h.bf16 %v337
        %v777 = vunpack.c.l.bf16 %v338
        %v778 = vunpack.c.h.bf16 %v338
        %v779 = vunpack.c.l.bf16 %v339
        %v780 = vunpack.c.h.bf16 %v339
        %v781 = vunpack.c.l.bf16 %v340
        %v782 = vunpack.c.h.bf16 %v340
        %v783 = vunpack.c.l.bf16 %v341
        %v784 = vunpack.c.h.bf16 %v341
        %v785 = vunpack.c.l.bf16 %v342
        %v786 = vunpack.c.h.bf16 %v342
        %v787 = vunpack.c.l.bf16 %v343
        %v788 = vunpack.c.h.bf16 %v343
        %v789 = vunpack.c.l.bf16 %v344
        %v790 = vunpack.c.h.bf16 %v344
        %v791 = vunpack.c.l.bf16 %v345
        %v792 = vunpack.c.h.bf16 %v345
        %v793 = vunpack.c.l.bf16 %v346
        %v794 = vunpack.c.h.bf16 %v346
        %v795 = vunpack.c.l.bf16 %v347
        %v796 = vunpack.c.h.bf16 %v347
        %v797 = vunpack.c.l.bf16 %v348
        %v798 = vunpack.c.h.bf16 %v348
        %v799 = vunpack.c.l.bf16 %v349
        %v800 = vunpack.c.h.bf16 %v349
        %v801 = vunpack.c.l.bf16 %v350
        %v802 = vunpack.c.h.bf16 %v350
        %v803 = vunpack.c.l.bf16 %v351
        %v804 = vunpack.c.h.bf16 %v351
        %v805 = vunpack.c.l.bf16 %v352
        %v806 = vunpack.c.h.bf16 %v352
        %v807 = vunpack.c.l.bf16 %v353
        %v808 = vunpack.c.h.bf16 %v353
        %v809 = vunpack.c.l.bf16 %v354
        %v810 = vunpack.c.h.bf16 %v354
        %v811 = vunpack.c.l.bf16 %v355
        %v812 = vunpack.c.h.bf16 %v355
        %v813 = vunpack.c.l.bf16 %v356
        %v814 = vunpack.c.h.bf16 %v356
        %v815 = vunpack.c.l.bf16 %v357
        %v816 = vunpack.c.h.bf16 %v357
        %v817 = vunpack.c.l.bf16 %v358
        %v818 = vunpack.c.h.bf16 %v358
        %v819 = vunpack.c.l.bf16 %v359
        %v820 = vunpack.c.h.bf16 %v359
        %v821 = vunpack.c.l.bf16 %v360
        %v822 = vunpack.c.h.bf16 %v360
        %v823 = vunpack.c.l.bf16 %v361
        %v824 = vunpack.c.h.bf16 %v361
        %v825 = vunpack.c.l.bf16 %v362
        %v826 = vunpack.c.h.bf16 %v362
        %v827 = vunpack.c.l.bf16 %v363
        %v828 = vunpack.c.h.bf16 %v363
        %v829 = vunpack.c.l.bf16 %v364
        %v830 = vunpack.c.h.bf16 %v364
        %v831 = vunpack.c.l.bf16 %v365
        %v832 = vunpack.c.h.bf16 %v365
        %v833 = vunpack.c.l.bf16 %v366
        %v834 = vunpack.c.h.bf16 %v366
        %v835 = vunpack.c.l.bf16 %v367
        %v836 = vunpack.c.h.bf16 %v367
        %v837 = vunpack.c.l.bf16 %v368
        %v838 = vunpack.c.h.bf16 %v368
        %v839 = vunpack.c.l.bf16 %v369
        %v840 = vunpack.c.h.bf16 %v369
        %v841 = vunpack.c.l.bf16 %v370
        %v842 = vunpack.c.h.bf16 %v370
        %v843 = vunpack.c.l.bf16 %v371
        %v844 = vunpack.c.h.bf16 %v371
        %v845 = vunpack.c.l.bf16 %v372
        %v846 = vunpack.c.h.bf16 %v372
        %v847 = vunpack.c.l.bf16 %v373
        %v848 = vunpack.c.h.bf16 %v373
        %v849 = vunpack.c.l.bf16 %v374
        %v850 = vunpack.c.h.bf16 %v374
        %v851 = vunpack.c.l.bf16 %v375
        %v852 = vunpack.c.h.bf16 %v375
        %v853 = vunpack.c.l.bf16 %v376
        %v854 = vunpack.c.h.bf16 %v376
        %v855 = vunpack.c.l.bf16 %v377
        %v856 = vunpack.c.h.bf16 %v377
        %v857 = vunpack.c.l.bf16 %v378
        %v858 = vunpack.c.h.bf16 %v378
        %v859 = vunpack.c.l.bf16 %v379
        %v860 = vunpack.c.h.bf16 %v379
        %v861 = vunpack.c.l.bf16 %v380
        %v862 = vunpack.c.h.bf16 %v380
        %v863 = vunpack.c.l.bf16 %v381
        %v864 = vunpack.c.h.bf16 %v381
        %v865 = vunpack.c.l.bf16 %v382
        %v866 = vunpack.c.h.bf16 %v382
        %v867 = vunpack.c.l.bf16 %v383
        %v868 = vunpack.c.h.bf16 %v383
        %v869 = vunpack.c.l.bf16 %v384
        %v870 = vunpack.c.h.bf16 %v384
        %v871 = vunpack.c.l.bf16 %v385
        %v872 = vunpack.c.h.bf16 %v385
        %v873 = vunpack.c.l.bf16 %v386
        %v874 = vunpack.c.h.bf16 %v386
        %v875 = vunpack.c.l.bf16 %v387
        %v876 = vunpack.c.h.bf16 %v387
        %v877 = vunpack.c.l.bf16 %v388
        %v878 = vunpack.c.h.bf16 %v388
        %v879 = vunpack.c.l.bf16 %v389
        %v880 = vunpack.c.h.bf16 %v389
        %v881 = vunpack.c.l.bf16 %v390
        %v882 = vunpack.c.h.bf16 %v390
        %v883 = vunpack.c.l.bf16 %v391
        %v884 = vunpack.c.h.bf16 %v391
        %v885 = vunpack.c.l.bf16 %v392
        %v886 = vunpack.c.h.bf16 %v392
        %v887 = vunpack.c.l.bf16 %v393
        %v888 = vunpack.c.h.bf16 %v393
        %v889 = vunpack.c.l.bf16 %v394
        %v890 = vunpack.c.h.bf16 %v394
        %v891 = vunpack.c.l.bf16 %v395
        %v892 = vunpack.c.h.bf16 %v395
        %v893 = vunpack.c.l.bf16 %v396
        %v894 = vunpack.c.h.bf16 %v396
        %v895 = vunpack.c.l.bf16 %v397
        %v896 = vunpack.c.h.bf16 %v397
        %v897 = vunpack.c.l.bf16 %v398
        %v898 = vunpack.c.h.bf16 %v398
        %v899 = vunpack.c.l.bf16 %v399
        %v900 = vunpack.c.h.bf16 %v399
        %v901 = vunpack.c.l.bf16 %v400
        %v902 = vunpack.c.h.bf16 %v400
        %v903 = vunpack.c.l.bf16 %v401
        %v904 = vunpack.c.h.bf16 %v401
        %v905 = vunpack.c.l.bf16 %v402
        %v906 = vunpack.c.h.bf16 %v402
        %v907 = vunpack.c.l.bf16 %v403
        %v908 = vunpack.c.h.bf16 %v403
        %v909 = vunpack.c.l.bf16 %v404
        %v910 = vunpack.c.h.bf16 %v404
        %v911 = vunpack.c.l.bf16 %v405
        %v912 = vunpack.c.h.bf16 %v405
        %v913 = vunpack.c.l.bf16 %v406
        %v914 = vunpack.c.h.bf16 %v406
        %v915 = vunpack.c.l.bf16 %v407
        %v916 = vunpack.c.h.bf16 %v407
        %v917 = vunpack.c.l.bf16 %v408
        %v918 = vunpack.c.h.bf16 %v408
        %v919 = vunpack.c.l.bf16 %v409
        %v920 = vunpack.c.h.bf16 %v409
        %v921 = vunpack.c.l.bf16 %v410
        %v922 = vunpack.c.h.bf16 %v410
        %923 = vst [vmem:[%s142] sm:$0xff] %v411
        %924 = vst [vmem:[%s142 + $0x8] sm:$0xff] %v412
        %925 = vst [vmem:[%s142 + $0x10] sm:$0xff] %v413
        %926 = vst [vmem:[%s142 + $0x18] sm:$0xff] %v414
        %927 = vst [vmem:[%s142 + $0x20] sm:$0xff] %v415
        %928 = vst [vmem:[%s142 + $0x28] sm:$0xff] %v416
        %929 = vst [vmem:[%s142 + $0x30] sm:$0xff] %v417
        %930 = vst [vmem:[%s142 + $0x38] sm:$0xff] %v418
        %931 = vst [vmem:[%s142 + $0x40] sm:$0xff] %v419
        %932 = vst [vmem:[%s142 + $0x48] sm:$0xff] %v420
        %933 = vst [vmem:[%s142 + $0x50] sm:$0xff] %v421
        %934 = vst [vmem:[%s142 + $0x58] sm:$0xff] %v422
        %935 = vst [vmem:[%s142 + $0x60] sm:$0xff] %v423
        %936 = vst [vmem:[%s142 + $0x68] sm:$0xff] %v424
        %937 = vst [vmem:[%s142 + $0x70] sm:$0xff] %v425
        %938 = vst [vmem:[%s142 + $0x78] sm:$0xff] %v426
        %939 = vst [vmem:[%s142 + $0x80] sm:$0xff] %v427
        %940 = vst [vmem:[%s142 + $0x88] sm:$0xff] %v428
        %941 = vst [vmem:[%s142 + $0x90] sm:$0xff] %v429
        %942 = vst [vmem:[%s142 + $0x98] sm:$0xff] %v430
        %943 = vst [vmem:[%s142 + $0xa0] sm:$0xff] %v431
        %944 = vst [vmem:[%s142 + $0xa8] sm:$0xff] %v432
        %945 = vst [vmem:[%s142 + $0xb0] sm:$0xff] %v433
        %946 = vst [vmem:[%s142 + $0xb8] sm:$0xff] %v434
        %947 = vst [vmem:[%s142 + $0xc0] sm:$0xff] %v435
        %948 = vst [vmem:[%s142 + $0xc8] sm:$0xff] %v436
        %949 = vst [vmem:[%s142 + $0xd0] sm:$0xff] %v437
        %950 = vst [vmem:[%s142 + $0xd8] sm:$0xff] %v438
        %951 = vst [vmem:[%s142 + $0xe0] sm:$0xff] %v439
        %952 = vst [vmem:[%s142 + $0xe8] sm:$0xff] %v440
        %953 = vst [vmem:[%s142 + $0xf0] sm:$0xff] %v441
        %954 = vst [vmem:[%s142 + $0xf8] sm:$0xff] %v442
        %955 = vst [vmem:[%s142 + $0x100] sm:$0xff] %v443
        %956 = vst [vmem:[%s142 + $0x108] sm:$0xff] %v444
        %957 = vst [vmem:[%s142 + $0x110] sm:$0xff] %v445
        %958 = vst [vmem:[%s142 + $0x118] sm:$0xff] %v446
        %959 = vst [vmem:[%s142 + $0x120] sm:$0xff] %v447
        %960 = vst [vmem:[%s142 + $0x128] sm:$0xff] %v448
        %961 = vst [vmem:[%s142 + $0x130] sm:$0xff] %v449
        %962 = vst [vmem:[%s142 + $0x138] sm:$0xff] %v450
        %963 = vst [vmem:[%s142 + $0x140] sm:$0xff] %v451
        %964 = vst [vmem:[%s142 + $0x148] sm:$0xff] %v452
        %965 = vst [vmem:[%s142 + $0x150] sm:$0xff] %v453
        %966 = vst [vmem:[%s142 + $0x158] sm:$0xff] %v454
        %967 = vst [vmem:[%s142 + $0x160] sm:$0xff] %v455
        %968 = vst [vmem:[%s142 + $0x168] sm:$0xff] %v456
        %969 = vst [vmem:[%s142 + $0x170] sm:$0xff] %v457
        %970 = vst [vmem:[%s142 + $0x178] sm:$0xff] %v458
        %971 = vst [vmem:[%s142 + $0x180] sm:$0xff] %v459
        %972 = vst [vmem:[%s142 + $0x188] sm:$0xff] %v460
        %973 = vst [vmem:[%s142 + $0x190] sm:$0xff] %v461
        %974 = vst [vmem:[%s142 + $0x198] sm:$0xff] %v462
        %975 = vst [vmem:[%s142 + $0x1a0] sm:$0xff] %v463
        %976 = vst [vmem:[%s142 + $0x1a8] sm:$0xff] %v464
        %977 = vst [vmem:[%s142 + $0x1b0] sm:$0xff] %v465
        %978 = vst [vmem:[%s142 + $0x1b8] sm:$0xff] %v466
        %979 = vst [vmem:[%s142 + $0x1c0] sm:$0xff] %v467
        %980 = vst [vmem:[%s142 + $0x1c8] sm:$0xff] %v468
        %981 = vst [vmem:[%s142 + $0x1d0] sm:$0xff] %v469
        %982 = vst [vmem:[%s142 + $0x1d8] sm:$0xff] %v470
        %983 = vst [vmem:[%s142 + $0x1e0] sm:$0xff] %v471
        %984 = vst [vmem:[%s142 + $0x1e8] sm:$0xff] %v472
        %985 = vst [vmem:[%s142 + $0x1f0] sm:$0xff] %v473
        %986 = vst [vmem:[%s142 + $0x1f8] sm:$0xff] %v474
        %987 = vst [vmem:[%s142 + $0x200] sm:$0xff] %v475
        %988 = vst [vmem:[%s142 + $0x208] sm:$0xff] %v476
        %989 = vst [vmem:[%s142 + $0x210] sm:$0xff] %v477
        %990 = vst [vmem:[%s142 + $0x218] sm:$0xff] %v478
        %991 = vst [vmem:[%s142 + $0x220] sm:$0xff] %v479
        %992 = vst [vmem:[%s142 + $0x228] sm:$0xff] %v480
        %993 = vst [vmem:[%s142 + $0x230] sm:$0xff] %v481
        %994 = vst [vmem:[%s142 + $0x238] sm:$0xff] %v482
        %995 = vst [vmem:[%s142 + $0x240] sm:$0xff] %v483
        %996 = vst [vmem:[%s142 + $0x248] sm:$0xff] %v484
        %997 = vst [vmem:[%s142 + $0x250] sm:$0xff] %v485
        %998 = vst [vmem:[%s142 + $0x258] sm:$0xff] %v486
        %999 = vst [vmem:[%s142 + $0x260] sm:$0xff] %v487
        %1000 = vst [vmem:[%s142 + $0x268] sm:$0xff] %v488
        %1001 = vst [vmem:[%s142 + $0x270] sm:$0xff] %v489
        %1002 = vst [vmem:[%s142 + $0x278] sm:$0xff] %v490
        %1003 = vst [vmem:[%s142 + $0x280] sm:$0xff] %v491
        %1004 = vst [vmem:[%s142 + $0x288] sm:$0xff] %v492
        %1005 = vst [vmem:[%s142 + $0x290] sm:$0xff] %v493
        %1006 = vst [vmem:[%s142 + $0x298] sm:$0xff] %v494
        %1007 = vst [vmem:[%s142 + $0x2a0] sm:$0xff] %v495
        %1008 = vst [vmem:[%s142 + $0x2a8] sm:$0xff] %v496
        %1009 = vst [vmem:[%s142 + $0x2b0] sm:$0xff] %v497
        %1010 = vst [vmem:[%s142 + $0x2b8] sm:$0xff] %v498
        %1011 = vst [vmem:[%s142 + $0x2c0] sm:$0xff] %v499
        %1012 = vst [vmem:[%s142 + $0x2c8] sm:$0xff] %v500
        %1013 = vst [vmem:[%s142 + $0x2d0] sm:$0xff] %v501
        %1014 = vst [vmem:[%s142 + $0x2d8] sm:$0xff] %v502
        %1015 = vst [vmem:[%s142 + $0x2e0] sm:$0xff] %v503
        %1016 = vst [vmem:[%s142 + $0x2e8] sm:$0xff] %v504
        %1017 = vst [vmem:[%s142 + $0x2f0] sm:$0xff] %v505
        %1018 = vst [vmem:[%s142 + $0x2f8] sm:$0xff] %v506
        %1019 = vst [vmem:[%s142 + $0x300] sm:$0xff] %v507
        %1020 = vst [vmem:[%s142 + $0x308] sm:$0xff] %v508
        %1021 = vst [vmem:[%s142 + $0x310] sm:$0xff] %v509
        %1022 = vst [vmem:[%s142 + $0x318] sm:$0xff] %v510
        %1023 = vst [vmem:[%s142 + $0x320] sm:$0xff] %v511
        %1024 = vst [vmem:[%s142 + $0x328] sm:$0xff] %v512
        %1025 = vst [vmem:[%s142 + $0x330] sm:$0xff] %v513
        %1026 = vst [vmem:[%s142 + $0x338] sm:$0xff] %v514
        %1027 = vst [vmem:[%s142 + $0x340] sm:$0xff] %v515
        %1028 = vst [vmem:[%s142 + $0x348] sm:$0xff] %v516
        %1029 = vst [vmem:[%s142 + $0x350] sm:$0xff] %v517
        %1030 = vst [vmem:[%s142 + $0x358] sm:$0xff] %v518
        %1031 = vst [vmem:[%s142 + $0x360] sm:$0xff] %v519
        %1032 = vst [vmem:[%s142 + $0x368] sm:$0xff] %v520
        %1033 = vst [vmem:[%s142 + $0x370] sm:$0xff] %v521
        %1034 = vst [vmem:[%s142 + $0x378] sm:$0xff] %v522
        %1035 = vst [vmem:[%s142 + $0x380] sm:$0xff] %v523
        %1036 = vst [vmem:[%s142 + $0x388] sm:$0xff] %v524
        %1037 = vst [vmem:[%s142 + $0x390] sm:$0xff] %v525
        %1038 = vst [vmem:[%s142 + $0x398] sm:$0xff] %v526
        %1039 = vst [vmem:[%s142 + $0x3a0] sm:$0xff] %v527
        %1040 = vst [vmem:[%s142 + $0x3a8] sm:$0xff] %v528
        %1041 = vst [vmem:[%s142 + $0x3b0] sm:$0xff] %v529
        %1042 = vst [vmem:[%s142 + $0x3b8] sm:$0xff] %v530
        %1043 = vst [vmem:[%s142 + $0x3c0] sm:$0xff] %v531
        %1044 = vst [vmem:[%s142 + $0x3c8] sm:$0xff] %v532
        %1045 = vst [vmem:[%s142 + $0x3d0] sm:$0xff] %v533
        %1046 = vst [vmem:[%s142 + $0x3d8] sm:$0xff] %v534
        %1047 = vst [vmem:[%s142 + $0x3e0] sm:$0xff] %v535
        %1048 = vst [vmem:[%s142 + $0x3e8] sm:$0xff] %v536
        %1049 = vst [vmem:[%s142 + $0x3f0] sm:$0xff] %v537
        %1050 = vst [vmem:[%s142 + $0x3f8] sm:$0xff] %v538
        %1051 = vst [vmem:[%s142 + $0x400] sm:$0xff] %v539
        %1052 = vst [vmem:[%s142 + $0x408] sm:$0xff] %v540
        %1053 = vst [vmem:[%s142 + $0x410] sm:$0xff] %v541
        %1054 = vst [vmem:[%s142 + $0x418] sm:$0xff] %v542
        %1055 = vst [vmem:[%s142 + $0x420] sm:$0xff] %v543
        %1056 = vst [vmem:[%s142 + $0x428] sm:$0xff] %v544
        %1057 = vst [vmem:[%s142 + $0x430] sm:$0xff] %v545
        %1058 = vst [vmem:[%s142 + $0x438] sm:$0xff] %v546
        %1059 = vst [vmem:[%s142 + $0x440] sm:$0xff] %v547
        %1060 = vst [vmem:[%s142 + $0x448] sm:$0xff] %v548
        %1061 = vst [vmem:[%s142 + $0x450] sm:$0xff] %v549
        %1062 = vst [vmem:[%s142 + $0x458] sm:$0xff] %v550
        %1063 = vst [vmem:[%s142 + $0x460] sm:$0xff] %v551
        %1064 = vst [vmem:[%s142 + $0x468] sm:$0xff] %v552
        %1065 = vst [vmem:[%s142 + $0x470] sm:$0xff] %v553
        %1066 = vst [vmem:[%s142 + $0x478] sm:$0xff] %v554
        %1067 = vst [vmem:[%s142 + $0x480] sm:$0xff] %v555
        %1068 = vst [vmem:[%s142 + $0x488] sm:$0xff] %v556
        %1069 = vst [vmem:[%s142 + $0x490] sm:$0xff] %v557
        %1070 = vst [vmem:[%s142 + $0x498] sm:$0xff] %v558
        %1071 = vst [vmem:[%s142 + $0x4a0] sm:$0xff] %v559
        %1072 = vst [vmem:[%s142 + $0x4a8] sm:$0xff] %v560
        %1073 = vst [vmem:[%s142 + $0x4b0] sm:$0xff] %v561
        %1074 = vst [vmem:[%s142 + $0x4b8] sm:$0xff] %v562
        %1075 = vst [vmem:[%s142 + $0x4c0] sm:$0xff] %v563
        %1076 = vst [vmem:[%s142 + $0x4c8] sm:$0xff] %v564
        %1077 = vst [vmem:[%s142 + $0x4d0] sm:$0xff] %v565
        %1078 = vst [vmem:[%s142 + $0x4d8] sm:$0xff] %v566
        %1079 = vst [vmem:[%s142 + $0x4e0] sm:$0xff] %v567
        %1080 = vst [vmem:[%s142 + $0x4e8] sm:$0xff] %v568
        %1081 = vst [vmem:[%s142 + $0x4f0] sm:$0xff] %v569
        %1082 = vst [vmem:[%s142 + $0x4f8] sm:$0xff] %v570
        %1083 = vst [vmem:[%s142 + $0x500] sm:$0xff] %v571
        %1084 = vst [vmem:[%s142 + $0x508] sm:$0xff] %v572
        %1085 = vst [vmem:[%s142 + $0x510] sm:$0xff] %v573
        %1086 = vst [vmem:[%s142 + $0x518] sm:$0xff] %v574
        %1087 = vst [vmem:[%s142 + $0x520] sm:$0xff] %v575
        %1088 = vst [vmem:[%s142 + $0x528] sm:$0xff] %v576
        %1089 = vst [vmem:[%s142 + $0x530] sm:$0xff] %v577
        %1090 = vst [vmem:[%s142 + $0x538] sm:$0xff] %v578
        %1091 = vst [vmem:[%s142 + $0x540] sm:$0xff] %v579
        %1092 = vst [vmem:[%s142 + $0x548] sm:$0xff] %v580
        %1093 = vst [vmem:[%s142 + $0x550] sm:$0xff] %v581
        %1094 = vst [vmem:[%s142 + $0x558] sm:$0xff] %v582
        %1095 = vst [vmem:[%s142 + $0x560] sm:$0xff] %v583
        %1096 = vst [vmem:[%s142 + $0x568] sm:$0xff] %v584
        %1097 = vst [vmem:[%s142 + $0x570] sm:$0xff] %v585
        %1098 = vst [vmem:[%s142 + $0x578] sm:$0xff] %v586
        %1099 = vst [vmem:[%s142 + $0x580] sm:$0xff] %v587
        %1100 = vst [vmem:[%s142 + $0x588] sm:$0xff] %v588
        %1101 = vst [vmem:[%s142 + $0x590] sm:$0xff] %v589
        %1102 = vst [vmem:[%s142 + $0x598] sm:$0xff] %v590
        %1103 = vst [vmem:[%s142 + $0x5a0] sm:$0xff] %v591
        %1104 = vst [vmem:[%s142 + $0x5a8] sm:$0xff] %v592
        %1105 = vst [vmem:[%s142 + $0x5b0] sm:$0xff] %v593
        %1106 = vst [vmem:[%s142 + $0x5b8] sm:$0xff] %v594
        %1107 = vst [vmem:[%s142 + $0x5c0] sm:$0xff] %v595
        %1108 = vst [vmem:[%s142 + $0x5c8] sm:$0xff] %v596
        %1109 = vst [vmem:[%s142 + $0x5d0] sm:$0xff] %v597
        %1110 = vst [vmem:[%s142 + $0x5d8] sm:$0xff] %v598
        %1111 = vst [vmem:[%s142 + $0x5e0] sm:$0xff] %v599
        %1112 = vst [vmem:[%s142 + $0x5e8] sm:$0xff] %v600
        %1113 = vst [vmem:[%s142 + $0x5f0] sm:$0xff] %v601
        %1114 = vst [vmem:[%s142 + $0x5f8] sm:$0xff] %v602
        %1115 = vst [vmem:[%s142 + $0x600] sm:$0xff] %v603
        %1116 = vst [vmem:[%s142 + $0x608] sm:$0xff] %v604
        %1117 = vst [vmem:[%s142 + $0x610] sm:$0xff] %v605
        %1118 = vst [vmem:[%s142 + $0x618] sm:$0xff] %v606
        %1119 = vst [vmem:[%s142 + $0x620] sm:$0xff] %v607
        %1120 = vst [vmem:[%s142 + $0x628] sm:$0xff] %v608
        %1121 = vst [vmem:[%s142 + $0x630] sm:$0xff] %v609
        %1122 = vst [vmem:[%s142 + $0x638] sm:$0xff] %v610
        %1123 = vst [vmem:[%s142 + $0x640] sm:$0xff] %v611
        %1124 = vst [vmem:[%s142 + $0x648] sm:$0xff] %v612
        %1125 = vst [vmem:[%s142 + $0x650] sm:$0xff] %v613
        %1126 = vst [vmem:[%s142 + $0x658] sm:$0xff] %v614
        %1127 = vst [vmem:[%s142 + $0x660] sm:$0xff] %v615
        %1128 = vst [vmem:[%s142 + $0x668] sm:$0xff] %v616
        %1129 = vst [vmem:[%s142 + $0x670] sm:$0xff] %v617
        %1130 = vst [vmem:[%s142 + $0x678] sm:$0xff] %v618
        %1131 = vst [vmem:[%s142 + $0x680] sm:$0xff] %v619
        %1132 = vst [vmem:[%s142 + $0x688] sm:$0xff] %v620
        %1133 = vst [vmem:[%s142 + $0x690] sm:$0xff] %v621
        %1134 = vst [vmem:[%s142 + $0x698] sm:$0xff] %v622
        %1135 = vst [vmem:[%s142 + $0x6a0] sm:$0xff] %v623
        %1136 = vst [vmem:[%s142 + $0x6a8] sm:$0xff] %v624
        %1137 = vst [vmem:[%s142 + $0x6b0] sm:$0xff] %v625
        %1138 = vst [vmem:[%s142 + $0x6b8] sm:$0xff] %v626
        %1139 = vst [vmem:[%s142 + $0x6c0] sm:$0xff] %v627
        %1140 = vst [vmem:[%s142 + $0x6c8] sm:$0xff] %v628
        %1141 = vst [vmem:[%s142 + $0x6d0] sm:$0xff] %v629
        %1142 = vst [vmem:[%s142 + $0x6d8] sm:$0xff] %v630
        %1143 = vst [vmem:[%s142 + $0x6e0] sm:$0xff] %v631
        %1144 = vst [vmem:[%s142 + $0x6e8] sm:$0xff] %v632
        %1145 = vst [vmem:[%s142 + $0x6f0] sm:$0xff] %v633
        %1146 = vst [vmem:[%s142 + $0x6f8] sm:$0xff] %v634
        %1147 = vst [vmem:[%s142 + $0x700] sm:$0xff] %v635
        %1148 = vst [vmem:[%s142 + $0x708] sm:$0xff] %v636
        %1149 = vst [vmem:[%s142 + $0x710] sm:$0xff] %v637
        %1150 = vst [vmem:[%s142 + $0x718] sm:$0xff] %v638
        %1151 = vst [vmem:[%s142 + $0x720] sm:$0xff] %v639
        %1152 = vst [vmem:[%s142 + $0x728] sm:$0xff] %v640
        %1153 = vst [vmem:[%s142 + $0x730] sm:$0xff] %v641
        %1154 = vst [vmem:[%s142 + $0x738] sm:$0xff] %v642
        %1155 = vst [vmem:[%s142 + $0x740] sm:$0xff] %v643
        %1156 = vst [vmem:[%s142 + $0x748] sm:$0xff] %v644
        %1157 = vst [vmem:[%s142 + $0x750] sm:$0xff] %v645
        %1158 = vst [vmem:[%s142 + $0x758] sm:$0xff] %v646
        %1159 = vst [vmem:[%s142 + $0x760] sm:$0xff] %v647
        %1160 = vst [vmem:[%s142 + $0x768] sm:$0xff] %v648
        %1161 = vst [vmem:[%s142 + $0x770] sm:$0xff] %v649
        %1162 = vst [vmem:[%s142 + $0x778] sm:$0xff] %v650
        %1163 = vst [vmem:[%s142 + $0x780] sm:$0xff] %v651
        %1164 = vst [vmem:[%s142 + $0x788] sm:$0xff] %v652
        %1165 = vst [vmem:[%s142 + $0x790] sm:$0xff] %v653
        %1166 = vst [vmem:[%s142 + $0x798] sm:$0xff] %v654
        %1167 = vst [vmem:[%s142 + $0x7a0] sm:$0xff] %v655
        %1168 = vst [vmem:[%s142 + $0x7a8] sm:$0xff] %v656
        %1169 = vst [vmem:[%s142 + $0x7b0] sm:$0xff] %v657
        %1170 = vst [vmem:[%s142 + $0x7b8] sm:$0xff] %v658
        %1171 = vst [vmem:[%s142 + $0x7c0] sm:$0xff] %v659
        %1172 = vst [vmem:[%s142 + $0x7c8] sm:$0xff] %v660
        %1173 = vst [vmem:[%s142 + $0x7d0] sm:$0xff] %v661
        %1174 = vst [vmem:[%s142 + $0x7d8] sm:$0xff] %v662
        %1175 = vst [vmem:[%s142 + $0x7e0] sm:$0xff] %v663
        %1176 = vst [vmem:[%s142 + $0x7e8] sm:$0xff] %v664
        %1177 = vst [vmem:[%s142 + $0x7f0] sm:$0xff] %v665
        %1178 = vst [vmem:[%s142 + $0x7f8] sm:$0xff] %v666
        %1179 = vst [vmem:[%s142 + $0x800] sm:$0xff] %v667
        %1180 = vst [vmem:[%s142 + $0x808] sm:$0xff] %v668
        %1181 = vst [vmem:[%s142 + $0x810] sm:$0xff] %v669
        %1182 = vst [vmem:[%s142 + $0x818] sm:$0xff] %v670
        %1183 = vst [vmem:[%s142 + $0x820] sm:$0xff] %v671
        %1184 = vst [vmem:[%s142 + $0x828] sm:$0xff] %v672
        %1185 = vst [vmem:[%s142 + $0x830] sm:$0xff] %v673
        %1186 = vst [vmem:[%s142 + $0x838] sm:$0xff] %v674
        %1187 = vst [vmem:[%s142 + $0x840] sm:$0xff] %v675
        %1188 = vst [vmem:[%s142 + $0x848] sm:$0xff] %v676
        %1189 = vst [vmem:[%s142 + $0x850] sm:$0xff] %v677
        %1190 = vst [vmem:[%s142 + $0x858] sm:$0xff] %v678
        %1191 = vst [vmem:[%s142 + $0x860] sm:$0xff] %v679
        %1192 = vst [vmem:[%s142 + $0x868] sm:$0xff] %v680
        %1193 = vst [vmem:[%s142 + $0x870] sm:$0xff] %v681
        %1194 = vst [vmem:[%s142 + $0x878] sm:$0xff] %v682
        %1195 = vst [vmem:[%s142 + $0x880] sm:$0xff] %v683
        %1196 = vst [vmem:[%s142 + $0x888] sm:$0xff] %v684
        %1197 = vst [vmem:[%s142 + $0x890] sm:$0xff] %v685
        %1198 = vst [vmem:[%s142 + $0x898] sm:$0xff] %v686
        %1199 = vst [vmem:[%s142 + $0x8a0] sm:$0xff] %v687
        %1200 = vst [vmem:[%s142 + $0x8a8] sm:$0xff] %v688
        %1201 = vst [vmem:[%s142 + $0x8b0] sm:$0xff] %v689
        %1202 = vst [vmem:[%s142 + $0x8b8] sm:$0xff] %v690
        %1203 = vst [vmem:[%s142 + $0x8c0] sm:$0xff] %v691
        %1204 = vst [vmem:[%s142 + $0x8c8] sm:$0xff] %v692
        %1205 = vst [vmem:[%s142 + $0x8d0] sm:$0xff] %v693
        %1206 = vst [vmem:[%s142 + $0x8d8] sm:$0xff] %v694
        %1207 = vst [vmem:[%s142 + $0x8e0] sm:$0xff] %v695
        %1208 = vst [vmem:[%s142 + $0x8e8] sm:$0xff] %v696
        %1209 = vst [vmem:[%s142 + $0x8f0] sm:$0xff] %v697
        %1210 = vst [vmem:[%s142 + $0x8f8] sm:$0xff] %v698
        %1211 = vst [vmem:[%s142 + $0x900] sm:$0xff] %v699
        %1212 = vst [vmem:[%s142 + $0x908] sm:$0xff] %v700
        %1213 = vst [vmem:[%s142 + $0x910] sm:$0xff] %v701
        %1214 = vst [vmem:[%s142 + $0x918] sm:$0xff] %v702
        %1215 = vst [vmem:[%s142 + $0x920] sm:$0xff] %v703
        %1216 = vst [vmem:[%s142 + $0x928] sm:$0xff] %v704
        %1217 = vst [vmem:[%s142 + $0x930] sm:$0xff] %v705
        %1218 = vst [vmem:[%s142 + $0x938] sm:$0xff] %v706
        %1219 = vst [vmem:[%s142 + $0x940] sm:$0xff] %v707
        %1220 = vst [vmem:[%s142 + $0x948] sm:$0xff] %v708
        %1221 = vst [vmem:[%s142 + $0x950] sm:$0xff] %v709
        %1222 = vst [vmem:[%s142 + $0x958] sm:$0xff] %v710
        %1223 = vst [vmem:[%s142 + $0x960] sm:$0xff] %v711
        %1224 = vst [vmem:[%s142 + $0x968] sm:$0xff] %v712
        %1225 = vst [vmem:[%s142 + $0x970] sm:$0xff] %v713
        %1226 = vst [vmem:[%s142 + $0x978] sm:$0xff] %v714
        %1227 = vst [vmem:[%s142 + $0x980] sm:$0xff] %v715
        %1228 = vst [vmem:[%s142 + $0x988] sm:$0xff] %v716
        %1229 = vst [vmem:[%s142 + $0x990] sm:$0xff] %v717
        %1230 = vst [vmem:[%s142 + $0x998] sm:$0xff] %v718
        %1231 = vst [vmem:[%s142 + $0x9a0] sm:$0xff] %v719
        %1232 = vst [vmem:[%s142 + $0x9a8] sm:$0xff] %v720
        %1233 = vst [vmem:[%s142 + $0x9b0] sm:$0xff] %v721
        %1234 = vst [vmem:[%s142 + $0x9b8] sm:$0xff] %v722
        %1235 = vst [vmem:[%s142 + $0x9c0] sm:$0xff] %v723
        %1236 = vst [vmem:[%s142 + $0x9c8] sm:$0xff] %v724
        %1237 = vst [vmem:[%s142 + $0x9d0] sm:$0xff] %v725
        %1238 = vst [vmem:[%s142 + $0x9d8] sm:$0xff] %v726
        %1239 = vst [vmem:[%s142 + $0x9e0] sm:$0xff] %v727
        %1240 = vst [vmem:[%s142 + $0x9e8] sm:$0xff] %v728
        %1241 = vst [vmem:[%s142 + $0x9f0] sm:$0xff] %v729
        %1242 = vst [vmem:[%s142 + $0x9f8] sm:$0xff] %v730
        %1243 = vst [vmem:[%s142 + $0xa00] sm:$0xff] %v731
        %1244 = vst [vmem:[%s142 + $0xa08] sm:$0xff] %v732
        %1245 = vst [vmem:[%s142 + $0xa10] sm:$0xff] %v733
        %1246 = vst [vmem:[%s142 + $0xa18] sm:$0xff] %v734
        %1247 = vst [vmem:[%s142 + $0xa20] sm:$0xff] %v735
        %1248 = vst [vmem:[%s142 + $0xa28] sm:$0xff] %v736
        %1249 = vst [vmem:[%s142 + $0xa30] sm:$0xff] %v737
        %1250 = vst [vmem:[%s142 + $0xa38] sm:$0xff] %v738
        %1251 = vst [vmem:[%s142 + $0xa40] sm:$0xff] %v739
        %1252 = vst [vmem:[%s142 + $0xa48] sm:$0xff] %v740
        %1253 = vst [vmem:[%s142 + $0xa50] sm:$0xff] %v741
        %1254 = vst [vmem:[%s142 + $0xa58] sm:$0xff] %v742
        %1255 = vst [vmem:[%s142 + $0xa60] sm:$0xff] %v743
        %1256 = vst [vmem:[%s142 + $0xa68] sm:$0xff] %v744
        %1257 = vst [vmem:[%s142 + $0xa70] sm:$0xff] %v745
        %1258 = vst [vmem:[%s142 + $0xa78] sm:$0xff] %v746
        %1259 = vst [vmem:[%s142 + $0xa80] sm:$0xff] %v747
        %1260 = vst [vmem:[%s142 + $0xa88] sm:$0xff] %v748
        %1261 = vst [vmem:[%s142 + $0xa90] sm:$0xff] %v749
        %1262 = vst [vmem:[%s142 + $0xa98] sm:$0xff] %v750
        %1263 = vst [vmem:[%s142 + $0xaa0] sm:$0xff] %v751
        %1264 = vst [vmem:[%s142 + $0xaa8] sm:$0xff] %v752
        %1265 = vst [vmem:[%s142 + $0xab0] sm:$0xff] %v753
        %1266 = vst [vmem:[%s142 + $0xab8] sm:$0xff] %v754
        %1267 = vst [vmem:[%s142 + $0xac0] sm:$0xff] %v755
        %1268 = vst [vmem:[%s142 + $0xac8] sm:$0xff] %v756
        %1269 = vst [vmem:[%s142 + $0xad0] sm:$0xff] %v757
        %1270 = vst [vmem:[%s142 + $0xad8] sm:$0xff] %v758
        %1271 = vst [vmem:[%s142 + $0xae0] sm:$0xff] %v759
        %1272 = vst [vmem:[%s142 + $0xae8] sm:$0xff] %v760
        %1273 = vst [vmem:[%s142 + $0xaf0] sm:$0xff] %v761
        %1274 = vst [vmem:[%s142 + $0xaf8] sm:$0xff] %v762
        %1275 = vst [vmem:[%s142 + $0xb00] sm:$0xff] %v763
        %1276 = vst [vmem:[%s142 + $0xb08] sm:$0xff] %v764
        %1277 = vst [vmem:[%s142 + $0xb10] sm:$0xff] %v765
        %1278 = vst [vmem:[%s142 + $0xb18] sm:$0xff] %v766
        %1279 = vst [vmem:[%s142 + $0xb20] sm:$0xff] %v767
        %1280 = vst [vmem:[%s142 + $0xb28] sm:$0xff] %v768
        %1281 = vst [vmem:[%s142 + $0xb30] sm:$0xff] %v769
        %1282 = vst [vmem:[%s142 + $0xb38] sm:$0xff] %v770
        %1283 = vst [vmem:[%s142 + $0xb40] sm:$0xff] %v771
        %1284 = vst [vmem:[%s142 + $0xb48] sm:$0xff] %v772
        %1285 = vst [vmem:[%s142 + $0xb50] sm:$0xff] %v773
        %1286 = vst [vmem:[%s142 + $0xb58] sm:$0xff] %v774
        %1287 = vst [vmem:[%s142 + $0xb60] sm:$0xff] %v775
        %1288 = vst [vmem:[%s142 + $0xb68] sm:$0xff] %v776
        %1289 = vst [vmem:[%s142 + $0xb70] sm:$0xff] %v777
        %1290 = vst [vmem:[%s142 + $0xb78] sm:$0xff] %v778
        %1291 = vst [vmem:[%s142 + $0xb80] sm:$0xff] %v779
        %1292 = vst [vmem:[%s142 + $0xb88] sm:$0xff] %v780
        %1293 = vst [vmem:[%s142 + $0xb90] sm:$0xff] %v781
        %1294 = vst [vmem:[%s142 + $0xb98] sm:$0xff] %v782
        %1295 = vst [vmem:[%s142 + $0xba0] sm:$0xff] %v783
        %1296 = vst [vmem:[%s142 + $0xba8] sm:$0xff] %v784
        %1297 = vst [vmem:[%s142 + $0xbb0] sm:$0xff] %v785
        %1298 = vst [vmem:[%s142 + $0xbb8] sm:$0xff] %v786
        %1299 = vst [vmem:[%s142 + $0xbc0] sm:$0xff] %v787
        %1300 = vst [vmem:[%s142 + $0xbc8] sm:$0xff] %v788
        %1301 = vst [vmem:[%s142 + $0xbd0] sm:$0xff] %v789
        %1302 = vst [vmem:[%s142 + $0xbd8] sm:$0xff] %v790
        %1303 = vst [vmem:[%s142 + $0xbe0] sm:$0xff] %v791
        %1304 = vst [vmem:[%s142 + $0xbe8] sm:$0xff] %v792
        %1305 = vst [vmem:[%s142 + $0xbf0] sm:$0xff] %v793
        %1306 = vst [vmem:[%s142 + $0xbf8] sm:$0xff] %v794
        %1307 = vst [vmem:[%s142 + $0xc00] sm:$0xff] %v795
        %1308 = vst [vmem:[%s142 + $0xc08] sm:$0xff] %v796
        %1309 = vst [vmem:[%s142 + $0xc10] sm:$0xff] %v797
        %1310 = vst [vmem:[%s142 + $0xc18] sm:$0xff] %v798
        %1311 = vst [vmem:[%s142 + $0xc20] sm:$0xff] %v799
        %1312 = vst [vmem:[%s142 + $0xc28] sm:$0xff] %v800
        %1313 = vst [vmem:[%s142 + $0xc30] sm:$0xff] %v801
        %1314 = vst [vmem:[%s142 + $0xc38] sm:$0xff] %v802
        %1315 = vst [vmem:[%s142 + $0xc40] sm:$0xff] %v803
        %1316 = vst [vmem:[%s142 + $0xc48] sm:$0xff] %v804
        %1317 = vst [vmem:[%s142 + $0xc50] sm:$0xff] %v805
        %1318 = vst [vmem:[%s142 + $0xc58] sm:$0xff] %v806
        %1319 = vst [vmem:[%s142 + $0xc60] sm:$0xff] %v807
        %1320 = vst [vmem:[%s142 + $0xc68] sm:$0xff] %v808
        %1321 = vst [vmem:[%s142 + $0xc70] sm:$0xff] %v809
        %1322 = vst [vmem:[%s142 + $0xc78] sm:$0xff] %v810
        %1323 = vst [vmem:[%s142 + $0xc80] sm:$0xff] %v811
        %1324 = vst [vmem:[%s142 + $0xc88] sm:$0xff] %v812
        %1325 = vst [vmem:[%s142 + $0xc90] sm:$0xff] %v813
        %1326 = vst [vmem:[%s142 + $0xc98] sm:$0xff] %v814
        %1327 = vst [vmem:[%s142 + $0xca0] sm:$0xff] %v815
        %1328 = vst [vmem:[%s142 + $0xca8] sm:$0xff] %v816
        %1329 = vst [vmem:[%s142 + $0xcb0] sm:$0xff] %v817
        %1330 = vst [vmem:[%s142 + $0xcb8] sm:$0xff] %v818
        %1331 = vst [vmem:[%s142 + $0xcc0] sm:$0xff] %v819
        %1332 = vst [vmem:[%s142 + $0xcc8] sm:$0xff] %v820
        %1333 = vst [vmem:[%s142 + $0xcd0] sm:$0xff] %v821
        %1334 = vst [vmem:[%s142 + $0xcd8] sm:$0xff] %v822
        %1335 = vst [vmem:[%s142 + $0xce0] sm:$0xff] %v823
        %1336 = vst [vmem:[%s142 + $0xce8] sm:$0xff] %v824
        %1337 = vst [vmem:[%s142 + $0xcf0] sm:$0xff] %v825
        %1338 = vst [vmem:[%s142 + $0xcf8] sm:$0xff] %v826
        %1339 = vst [vmem:[%s142 + $0xd00] sm:$0xff] %v827
        %1340 = vst [vmem:[%s142 + $0xd08] sm:$0xff] %v828
        %1341 = vst [vmem:[%s142 + $0xd10] sm:$0xff] %v829
        %1342 = vst [vmem:[%s142 + $0xd18] sm:$0xff] %v830
        %1343 = vst [vmem:[%s142 + $0xd20] sm:$0xff] %v831
        %1344 = vst [vmem:[%s142 + $0xd28] sm:$0xff] %v832
        %1345 = vst [vmem:[%s142 + $0xd30] sm:$0xff] %v833
        %1346 = vst [vmem:[%s142 + $0xd38] sm:$0xff] %v834
        %1347 = vst [vmem:[%s142 + $0xd40] sm:$0xff] %v835
        %1348 = vst [vmem:[%s142 + $0xd48] sm:$0xff] %v836
        %1349 = vst [vmem:[%s142 + $0xd50] sm:$0xff] %v837
        %1350 = vst [vmem:[%s142 + $0xd58] sm:$0xff] %v838
        %1351 = vst [vmem:[%s142 + $0xd60] sm:$0xff] %v839
        %1352 = vst [vmem:[%s142 + $0xd68] sm:$0xff] %v840
        %1353 = vst [vmem:[%s142 + $0xd70] sm:$0xff] %v841
        %1354 = vst [vmem:[%s142 + $0xd78] sm:$0xff] %v842
        %1355 = vst [vmem:[%s142 + $0xd80] sm:$0xff] %v843
        %1356 = vst [vmem:[%s142 + $0xd88] sm:$0xff] %v844
        %1357 = vst [vmem:[%s142 + $0xd90] sm:$0xff] %v845
        %1358 = vst [vmem:[%s142 + $0xd98] sm:$0xff] %v846
        %1359 = vst [vmem:[%s142 + $0xda0] sm:$0xff] %v847
        %1360 = vst [vmem:[%s142 + $0xda8] sm:$0xff] %v848
        %1361 = vst [vmem:[%s142 + $0xdb0] sm:$0xff] %v849
        %1362 = vst [vmem:[%s142 + $0xdb8] sm:$0xff] %v850
        %1363 = vst [vmem:[%s142 + $0xdc0] sm:$0xff] %v851
        %1364 = vst [vmem:[%s142 + $0xdc8] sm:$0xff] %v852
        %1365 = vst [vmem:[%s142 + $0xdd0] sm:$0xff] %v853
        %1366 = vst [vmem:[%s142 + $0xdd8] sm:$0xff] %v854
        %1367 = vst [vmem:[%s142 + $0xde0] sm:$0xff] %v855
        %1368 = vst [vmem:[%s142 + $0xde8] sm:$0xff] %v856
        %1369 = vst [vmem:[%s142 + $0xdf0] sm:$0xff] %v857
        %1370 = vst [vmem:[%s142 + $0xdf8] sm:$0xff] %v858
        %1371 = vst [vmem:[%s142 + $0xe00] sm:$0xff] %v859
        %1372 = vst [vmem:[%s142 + $0xe08] sm:$0xff] %v860
        %1373 = vst [vmem:[%s142 + $0xe10] sm:$0xff] %v861
        %1374 = vst [vmem:[%s142 + $0xe18] sm:$0xff] %v862
        %1375 = vst [vmem:[%s142 + $0xe20] sm:$0xff] %v863
        %1376 = vst [vmem:[%s142 + $0xe28] sm:$0xff] %v864
        %1377 = vst [vmem:[%s142 + $0xe30] sm:$0xff] %v865
        %1378 = vst [vmem:[%s142 + $0xe38] sm:$0xff] %v866
        %1379 = vst [vmem:[%s142 + $0xe40] sm:$0xff] %v867
        %1380 = vst [vmem:[%s142 + $0xe48] sm:$0xff] %v868
        %1381 = vst [vmem:[%s142 + $0xe50] sm:$0xff] %v869
        %1382 = vst [vmem:[%s142 + $0xe58] sm:$0xff] %v870
        %1383 = vst [vmem:[%s142 + $0xe60] sm:$0xff] %v871
        %1384 = vst [vmem:[%s142 + $0xe68] sm:$0xff] %v872
        %1385 = vst [vmem:[%s142 + $0xe70] sm:$0xff] %v873
        %1386 = vst [vmem:[%s142 + $0xe78] sm:$0xff] %v874
        %1387 = vst [vmem:[%s142 + $0xe80] sm:$0xff] %v875
        %1388 = vst [vmem:[%s142 + $0xe88] sm:$0xff] %v876
        %1389 = vst [vmem:[%s142 + $0xe90] sm:$0xff] %v877
        %1390 = vst [vmem:[%s142 + $0xe98] sm:$0xff] %v878
        %1391 = vst [vmem:[%s142 + $0xea0] sm:$0xff] %v879
        %1392 = vst [vmem:[%s142 + $0xea8] sm:$0xff] %v880
        %1393 = vst [vmem:[%s142 + $0xeb0] sm:$0xff] %v881
        %1394 = vst [vmem:[%s142 + $0xeb8] sm:$0xff] %v882
        %1395 = vst [vmem:[%s142 + $0xec0] sm:$0xff] %v883
        %1396 = vst [vmem:[%s142 + $0xec8] sm:$0xff] %v884
        %1397 = vst [vmem:[%s142 + $0xed0] sm:$0xff] %v885
        %1398 = vst [vmem:[%s142 + $0xed8] sm:$0xff] %v886
        %1399 = vst [vmem:[%s142 + $0xee0] sm:$0xff] %v887
        %1400 = vst [vmem:[%s142 + $0xee8] sm:$0xff] %v888
        %1401 = vst [vmem:[%s142 + $0xef0] sm:$0xff] %v889
        %1402 = vst [vmem:[%s142 + $0xef8] sm:$0xff] %v890
        %1403 = vst [vmem:[%s142 + $0xf00] sm:$0xff] %v891
        %1404 = vst [vmem:[%s142 + $0xf08] sm:$0xff] %v892
        %1405 = vst [vmem:[%s142 + $0xf10] sm:$0xff] %v893
        %1406 = vst [vmem:[%s142 + $0xf18] sm:$0xff] %v894
        %1407 = vst [vmem:[%s142 + $0xf20] sm:$0xff] %v895
        %1408 = vst [vmem:[%s142 + $0xf28] sm:$0xff] %v896
        %1409 = vst [vmem:[%s142 + $0xf30] sm:$0xff] %v897
        %1410 = vst [vmem:[%s142 + $0xf38] sm:$0xff] %v898
        %1411 = vst [vmem:[%s142 + $0xf40] sm:$0xff] %v899
        %1412 = vst [vmem:[%s142 + $0xf48] sm:$0xff] %v900
        %1413 = vst [vmem:[%s142 + $0xf50] sm:$0xff] %v901
        %1414 = vst [vmem:[%s142 + $0xf58] sm:$0xff] %v902
        %1415 = vst [vmem:[%s142 + $0xf60] sm:$0xff] %v903
        %1416 = vst [vmem:[%s142 + $0xf68] sm:$0xff] %v904
        %1417 = vst [vmem:[%s142 + $0xf70] sm:$0xff] %v905
        %1418 = vst [vmem:[%s142 + $0xf78] sm:$0xff] %v906
        %1419 = vst [vmem:[%s142 + $0xf80] sm:$0xff] %v907
        %1420 = vst [vmem:[%s142 + $0xf88] sm:$0xff] %v908
        %1421 = vst [vmem:[%s142 + $0xf90] sm:$0xff] %v909
        %1422 = vst [vmem:[%s142 + $0xf98] sm:$0xff] %v910
        %1423 = vst [vmem:[%s142 + $0xfa0] sm:$0xff] %v911
        %1424 = vst [vmem:[%s142 + $0xfa8] sm:$0xff] %v912
        %1425 = vst [vmem:[%s142 + $0xfb0] sm:$0xff] %v913
        %1426 = vst [vmem:[%s142 + $0xfb8] sm:$0xff] %v914
        %1427 = vst [vmem:[%s142 + $0xfc0] sm:$0xff] %v915
        %1428 = vst [vmem:[%s142 + $0xfc8] sm:$0xff] %v916
        %1429 = vst [vmem:[%s142 + $0xfd0] sm:$0xff] %v917
        %1430 = vst [vmem:[%s142 + $0xfd8] sm:$0xff] %v918
        %1431 = vst [vmem:[%s142 + $0xfe0] sm:$0xff] %v919
        %1432 = vst [vmem:[%s142 + $0xfe8] sm:$0xff] %v920
        %1433 = vst [vmem:[%s142 + $0xff0] sm:$0xff] %v921
        %1434 = vst [vmem:[%s142 + $0xff8] sm:$0xff] %v922
        %s1435 = sand.u32 %s52, 1
        %s1436 = scalar_lea.sflag [#allocation4], %s1435
        %s1437 = sand.u32 %s52, 1
        %s1438 = smul.addr %s1437, 4096
        %s1439 = scalar_lea.vmem [#allocation5], %s1438
        // Predicated region
        $region29: #{tpu_custom_call.1} parent=23 // pred_check
          %p1440 = pneg %p62
        $region30: #{tpu_custom_call.1} parent=23 // pred_check_branch
          %1442 = sbr.rel (%p1440) target = $region32
        $region31: #{tpu_custom_call.1} parent=23 // pred_region
          %s1443 = smul.u32 32, %s18
          %s1444 = ssub.s32 125, %s1443
          %p1445 = scmp.lt.s32.totalorder %s1444, 32
          %s1446 = scalar_select %p1445, %s1444, 32
          %s1447 = smul.u32 128, %s1446
          %s1448 = smul.u32 %s1447, 16
          %s1450 = ssub.s32 65536, %s1448
          %1451 = vsyncadd %s1436, %s1450
          %p1452 = scmp.ne.s32.totalorder 0, %s1448
          %s1453 = smul.addr %s1443, 16
          %s1454 = smul.addr %s1453, 128
          %s1455 = scalar_lea.hbm %s1, %s1454
          %s1456 = smul.u32 128, %s1446
          %s1457 = sshll.u32 %s1439, 4
          %s1458 = int_to_ptr.vmem [resolvable:$true] %s1457
          %s1459 = sshll.u32 %s1456, 4
          %1463 = dma.vmem_to_hbm [thread:$0]  (%p1452), %s1458, %s1459, %s1455, %s1436, 2048, 2048, 128
        $region32: #{tpu_custom_call.1} parent=23 // pred_fallthru
          _
      $region24: #{tpu_custom_call.1} parent=5 // pred_fallthru
        _
      %p1464 = scmp.le.s32.totalorder 2, %s13
      // Predicated region
      $region33: #{tpu_custom_call.1} parent=5 // pred_check
        %p1465 = pneg %p1464
      $region34: #{tpu_custom_call.1} parent=5 // pred_check_branch
        %1467 = sbr.rel (%p1465) target = $region36
      $region35: #{tpu_custom_call.1} parent=5 // pred_region
        %s1468 = ssub.s32 %s13, 2
        // Predicated region
        $region37: #{tpu_custom_call.1} parent=35 // pred_check
          %p1469 = pneg %p68
        $region38: #{tpu_custom_call.1} parent=35 // pred_check_branch
          %1471 = sbr.rel (%p1469) target = $region40
        $region39: #{tpu_custom_call.1} parent=35 // pred_region
          %s1472 = sand.u32 %s53, 1
          %s1473 = scalar_lea.sflag [#allocation4], %s1472
          %s1474 = sand.u32 %s53, 1
          %s1475 = smul.addr %s1474, 4096
          %s1476 = scalar_lea.vmem [#allocation5], %s1475
          %1477 = dma.done %s1473, 65536
        $region40: #{tpu_custom_call.1} parent=35 // pred_fallthru
          _
      $region36: #{tpu_custom_call.1} parent=5 // pred_fallthru
        _
    $region6: #{tpu_custom_call.1} parent=1 // loop_footer
      %s17 = sadd.s32 1, %s13
    $region7: #{tpu_custom_call.1} parent=1 // loop_footer_branch
      %12 = sbr.rel target = $region3
    $region8: #{tpu_custom_call.1} parent=1 // loop_exit
      _
    %1478 = vsyncpa [#allocation3], 1
    %s1479 = scalar_lea.sflag [#allocation3], 1
    %1480 = vsyncpa %s1479, 1
    %1481 = vsyncpa [#allocation4], 1
    %s1482 = scalar_lea.sflag [#allocation4], 1
    %1483 = vsyncpa %s1482, 1

</llo_original>
